<compile_context>
chip_gen: v7x
topology: tpu7x:2x2x1
jax: 0.10.0
libtpu: 0.0.40
codegen_flags: <defaults>
</compile_context>

<pallas_src>
import functools
import math

import jax
import jax.numpy as jnp
from jax.experimental import pallas as pl
from jax.experimental.pallas import tpu as pltpu


def _round_up(x, m):
    return ((x + m - 1) // m) * m


def _interp_conv_kernel(x_ref, colup_ref, w2_ref, b_ref, o_ref, u_ref, slab_ref,
                        *, C, H, Hu, Wu, Wp, scale, negative_slope):
    """Fused nearest-upsample -> 3x3 'same' conv -> LeakyReLU for one image.

    x_ref    : (1, H*C, W)    VMEM  input image, rows ordered (h, ci)
    colup_ref: (W, Wu)        VMEM  0/1 nearest width-upsample operator (resident)
    w2_ref   : (C, 9*C)       VMEM  conv weights, cols ordered ((dy,dx), ci)
    b_ref    : (C, 1)         VMEM  bias
    o_ref    : (1, C, Hu*Wp)  VMEM  lane-dense flattened output (wrapper un-flattens)
    u_ref    : (C, L)         VMEM  scratch: flattened zero-padded upsampled planes
    slab_ref : (9*C, Hu*Wp)   VMEM  scratch: im2col slab (contraction dim x spatial)
    """
    x = x_ref[0]                                           # (H*C, W)

    # 1) Nearest width-upsample for all channels & rows in ONE MXU matmul.
    xw = jnp.dot(x, colup_ref[...],
                 preferred_element_type=jnp.float32)       # (H*C, Wu)

    # 2) Nearest height-upsample + 1-px zero pad, fused as zero-FLOP row-block
    #    placement into the flattened padded plane (row yp, col xp -> flat yp*Wp+xp).
    u_ref[...] = jnp.zeros_like(u_ref)
    for h in range(H):
        blk = xw[h * C:(h + 1) * C, :]                     # (C, Wu), all channels, row h
        for s in range(scale):
            yu = h * scale + s
            start = (1 + yu) * Wp + 1                      # +1 row / +1 col of zero pad
            u_ref[:, start:start + Wu] = blk

    # 3) im2col: each 3x3 tap is one contiguous slice of the flattened padded plane
    #    (output flat col p = y*Wp + x; cols x in [Wu, Wp) are junk, dropped by the
    #    wrapper).  Written straight into the slab - no per-output-channel re-reads.
    u = u_ref[...]                                         # (C, L)
    for dy in range(3):
        for dx in range(3):
            t = dy * 3 + dx
            off = dy * Wp + dx
            slab_ref[t * C:(t + 1) * C, :] = u[:, off:off + Hu * Wp]

    # 4) Channel contraction on the MXU, bias once, LeakyReLU, lane-dense store.
    acc = jnp.dot(w2_ref[...], slab_ref[...],
                  preferred_element_type=jnp.float32)      # (C, Hu*Wp)
    acc = acc + b_ref[...]                                 # single (C,1) broadcast
    acc = jnp.where(acc >= 0.0, acc, negative_slope * acc)
    o_ref[0] = acc.astype(o_ref.dtype)


def _nearest_upsample_operator(in_size, scale, dtype=jnp.float32):
    """0/1 matrix U (in_size, in_size*scale): x @ U = nearest-upsample(x) along axis."""
    src = jnp.arange(in_size * scale) // scale             # integer scale_factor only
    return (src[None, :] == jnp.arange(in_size)[:, None]).astype(dtype)


def interpolate_conv(x, weight, bias, *, scale_factor=2, negative_slope=0.2):
    """x: (N, C, H, W) NCHW. weight: (C, C, 3, 3) OIHW. bias: (C,).
    Nearest upsample (integer scale) -> conv3x3 pad=1 -> LeakyReLU(negative_slope)."""
    assert isinstance(scale_factor, int) and scale_factor >= 1
    N, C, H, W = x.shape
    Hu, Wu = H * scale_factor, W * scale_factor

    # Padded row width of the flattened plane; chosen so the kernel's lane-dense
    # output width Hu*Wp is a multiple of 128 -> unmasked full-width stores.
    m = max(1, 128 // math.gcd(Hu, 128))
    Wp = _round_up(Wu + 2, m)
    L = _round_up(Hu * Wp + 2 * Wp + 2, 128)               # flattened plane length

    # Wrapper-side layout plumbing only (free XLA reshapes; nothing upsampled in HBM).
    x3 = x.astype(jnp.float32).transpose(0, 2, 1, 3).reshape(N, H * C, W)     # rows=(h,ci)
    colup = _nearest_upsample_operator(W, scale_factor)                       # (W, Wu)
    w2 = weight.astype(jnp.float32).transpose(0, 2, 3, 1).reshape(C, 9 * C)   # (co,(dy,dx,ci))
    b2 = bias.astype(jnp.float32).reshape(C, 1)

    kernel = functools.partial(
        _interp_conv_kernel, C=C, H=H, Hu=Hu, Wu=Wu, Wp=Wp,
        scale=scale_factor, negative_slope=negative_slope)

    out_flat = pl.pallas_call(
        kernel,
        out_shape=jax.ShapeDtypeStruct((N, C, Hu * Wp), jnp.float32),
        grid=(N,),
        in_specs=[
            pl.BlockSpec((1, H * C, W), lambda n: (n, 0, 0)),
            pl.BlockSpec((W, Wu), lambda n: (0, 0)),        # resident operator
            pl.BlockSpec((C, 9 * C), lambda n: (0, 0)),     # resident weights (VMEM)
            pl.BlockSpec((C, 1), lambda n: (0, 0)),         # resident bias (VMEM)
        ],
        out_specs=pl.BlockSpec((1, C, Hu * Wp), lambda n: (n, 0, 0)),
        scratch_shapes=[
            pltpu.VMEM((C, L), jnp.float32),                # flattened padded planes
            pltpu.VMEM((9 * C, Hu * Wp), jnp.float32),      # im2col slab
        ],
        compiler_params=pltpu.CompilerParams(
            dimension_semantics=("parallel",)),
    )(x3, colup, w2, b2)

    # Un-flatten and drop the junk columns (wrapper-side, free).
    out = out_flat.reshape(N, C, Hu, Wp)[:, :, :, :Wu]
    return out.astype(x.dtype)


def _reference(x, weight, bias, *, scale_factor=2, negative_slope=0.2):
    """Pure-JAX reference (same semantics as the PyTorch module)."""
    x_up = jnp.repeat(jnp.repeat(x, scale_factor, axis=2), scale_factor, axis=3)
    y = jax.lax.conv_general_dilated(
        x_up, weight,
        window_strides=(1, 1),
        padding=((1, 1), (1, 1)),
        dimension_numbers=("NCHW", "OIHW", "NCHW"),
    ) + bias[None, :, None, None]
    return jnp.where(y >= 0.0, y, negative_slope * y)


if __name__ == "__main__":
    key = jax.random.PRNGKey(0)
    kx, kw, kb = jax.random.split(key, 3)

    N, C, H, W = 2, 4, 16, 16          # num_features = 4
    scale_factor = 2
    negative_slope = 0.2               # esrgan LeakyReLU partial

    x = jax.random.normal(kx, (N, C, H, W), dtype=jnp.float32)
    weight = jax.random.normal(kw, (C, C, 3, 3), dtype=jnp.float32) * 0.1
    bias = jax.random.normal(kb, (C,), dtype=jnp.float32) * 0.1

    out = interpolate_conv(x, weight, bias,
                           scale_factor=scale_factor,
                           negative_slope=negative_slope)
    out = jax.block_until_ready(out)

    ref = jax.block_until_ready(
        _reference(x, weight, bias,
                   scale_factor=scale_factor,
                   negative_slope=negative_slope))

    assert out.shape == (N, C, H * scale_factor, W * scale_factor), out.shape
    assert jnp.allclose(out, ref, atol=1e-4, rtol=1e-4), float(jnp.max(jnp.abs(out - ref)))

    print("KERNEL_OK")
</pallas_src>

<mosaic_0001>
module attributes {stable_mosaic.version = 11 : i64} {
  func.func @_interp_conv_kernel(%arg0: i32, %arg1: memref<1x64x16xf32, #tpu.memory_space<vmem>>, %arg2: memref<16x32xf32, #tpu.memory_space<vmem>>, %arg3: memref<4x36xf32, #tpu.memory_space<vmem>>, %arg4: memref<4x1xf32, #tpu.memory_space<vmem>>, %arg5: memref<1x4x1152xf32, #tpu.memory_space<vmem>>, %arg6: memref<4x1280xf32, #tpu.memory_space<vmem>>, %arg7: memref<36x1152xf32, #tpu.memory_space<vmem>>) attributes {dimension_semantics = [#tpu.dimension_semantics<parallel>], iteration_bounds = array<i64: 2>, scalar_prefetch = 0 : i64, scratch_operands = 2 : i64, tpu.core_type = #tpu.core_type<tc>, window_params = [{transform_indices = @transform_0, window_bounds = array<i64: 1, 64, 16>}, {pipeline_mode = #tpu.pipeline_mode<synchronous>, transform_indices = @transform_1, window_bounds = array<i64: 16, 32>}, {pipeline_mode = #tpu.pipeline_mode<synchronous>, transform_indices = @transform_2, window_bounds = array<i64: 4, 36>}, {pipeline_mode = #tpu.pipeline_mode<synchronous>, transform_indices = @transform_3, window_bounds = array<i64: 4, 1>}, {transform_indices = @transform_4, window_bounds = array<i64: 1, 4, 1152>}]} {
    %c0 = arith.constant 0 : index
    %c0_0 = arith.constant 0 : index
    %c0_1 = arith.constant 0 : index
    %0 = vector.load %arg1[%c0, %c0_0, %c0_1] : memref<1x64x16xf32, #tpu.memory_space<vmem>>, vector<1x64x16xf32>
    %1 = vector.shape_cast %0 : vector<1x64x16xf32> to vector<64x16xf32>
    %c0_2 = arith.constant 0 : index
    %c0_3 = arith.constant 0 : index
    %2 = vector.load %arg2[%c0_2, %c0_3] : memref<16x32xf32, #tpu.memory_space<vmem>>, vector<16x32xf32>
    %cst = arith.constant dense<0.000000e+00> : vector<64x32xf32>
    %3 = tpu.matmul %1, %2, %cst {dimension_numbers = #tpu.dot_dimension_numbers<[1], [0], [0], [1], [0, 0, 1, 1], [], []>} : vector<64x16xf32>, vector<16x32xf32>, vector<64x32xf32> -> vector<64x32xf32>
    %cst_4 = arith.constant 0.000000e+00 : f32
    %4 = vector.broadcast %cst_4 : f32 to vector<4x1280xf32>
    %c0_5 = arith.constant 0 : index
    %c0_6 = arith.constant 0 : index
    %5 = vector.load %arg6[%c0_5, %c0_6] : memref<4x1280xf32, #tpu.memory_space<vmem>>, vector<4x1280xf32>
    tpu.vector_store %arg6[%c0_5, %c0_6], %4 {strides = array<i32>} : memref<4x1280xf32, #tpu.memory_space<vmem>>, vector<4x1280xf32>,
    %6 = vector.extract_strided_slice %3 {offsets = [0, 0], sizes = [4, 32], strides = [1, 1]} : vector<64x32xf32> to vector<4x32xf32>
    %c0_7 = arith.constant 0 : index
    %c37 = arith.constant 37 : index
    %7 = vector.load %arg6[%c0_7, %c37] : memref<4x1280xf32, #tpu.memory_space<vmem>>, vector<4x32xf32>
    tpu.vector_store %arg6[%c0_7, %c37], %6 {strides = array<i32>} : memref<4x1280xf32, #tpu.memory_space<vmem>>, vector<4x32xf32>,
    %c0_8 = arith.constant 0 : index
    %c73 = arith.constant 73 : index
    %8 = vector.load %arg6[%c0_8, %c73] : memref<4x1280xf32, #tpu.memory_space<vmem>>, vector<4x32xf32>
    tpu.vector_store %arg6[%c0_8, %c73], %6 {strides = array<i32>} : memref<4x1280xf32, #tpu.memory_space<vmem>>, vector<4x32xf32>,
    %9 = vector.extract_strided_slice %3 {offsets = [4, 0], sizes = [4, 32], strides = [1, 1]} : vector<64x32xf32> to vector<4x32xf32>
    %c0_9 = arith.constant 0 : index
    %c109 = arith.constant 109 : index
    %10 = vector.load %arg6[%c0_9, %c109] : memref<4x1280xf32, #tpu.memory_space<vmem>>, vector<4x32xf32>
    tpu.vector_store %arg6[%c0_9, %c109], %9 {strides = array<i32>} : memref<4x1280xf32, #tpu.memory_space<vmem>>, vector<4x32xf32>,
    %c0_10 = arith.constant 0 : index
    %c145 = arith.constant 145 : index
    %11 = vector.load %arg6[%c0_10, %c145] : memref<4x1280xf32, #tpu.memory_space<vmem>>, vector<4x32xf32>
    tpu.vector_store %arg6[%c0_10, %c145], %9 {strides = array<i32>} : memref<4x1280xf32, #tpu.memory_space<vmem>>, vector<4x32xf32>,
    %12 = vector.extract_strided_slice %3 {offsets = [8, 0], sizes = [4, 32], strides = [1, 1]} : vector<64x32xf32> to vector<4x32xf32>
    %c0_11 = arith.constant 0 : index
    %c181 = arith.constant 181 : index
    %13 = vector.load %arg6[%c0_11, %c181] : memref<4x1280xf32, #tpu.memory_space<vmem>>, vector<4x32xf32>
    tpu.vector_store %arg6[%c0_11, %c181], %12 {strides = array<i32>} : memref<4x1280xf32, #tpu.memory_space<vmem>>, vector<4x32xf32>,
    %c0_12 = arith.constant 0 : index
    %c217 = arith.constant 217 : index
    %14 = vector.load %arg6[%c0_12, %c217] : memref<4x1280xf32, #tpu.memory_space<vmem>>, vector<4x32xf32>
    tpu.vector_store %arg6[%c0_12, %c217], %12 {strides = array<i32>} : memref<4x1280xf32, #tpu.memory_space<vmem>>, vector<4x32xf32>,
    %15 = vector.extract_strided_slice %3 {offsets = [12, 0], sizes = [4, 32], strides = [1, 1]} : vector<64x32xf32> to vector<4x32xf32>
    %c0_13 = arith.constant 0 : index
    %c253 = arith.constant 253 : index
    %16 = vector.load %arg6[%c0_13, %c253] : memref<4x1280xf32, #tpu.memory_space<vmem>>, vector<4x32xf32>
    tpu.vector_store %arg6[%c0_13, %c253], %15 {strides = array<i32>} : memref<4x1280xf32, #tpu.memory_space<vmem>>, vector<4x32xf32>,
    %c0_14 = arith.constant 0 : index
    %c289 = arith.constant 289 : index
    %17 = vector.load %arg6[%c0_14, %c289] : memref<4x1280xf32, #tpu.memory_space<vmem>>, vector<4x32xf32>
    tpu.vector_store %arg6[%c0_14, %c289], %15 {strides = array<i32>} : memref<4x1280xf32, #tpu.memory_space<vmem>>, vector<4x32xf32>,
    %18 = vector.extract_strided_slice %3 {offsets = [16, 0], sizes = [4, 32], strides = [1, 1]} : vector<64x32xf32> to vector<4x32xf32>
    %c0_15 = arith.constant 0 : index
    %c325 = arith.constant 325 : index
    %19 = vector.load %arg6[%c0_15, %c325] : memref<4x1280xf32, #tpu.memory_space<vmem>>, vector<4x32xf32>
    tpu.vector_store %arg6[%c0_15, %c325], %18 {strides = array<i32>} : memref<4x1280xf32, #tpu.memory_space<vmem>>, vector<4x32xf32>,
    %c0_16 = arith.constant 0 : index
    %c361 = arith.constant 361 : index
    %20 = vector.load %arg6[%c0_16, %c361] : memref<4x1280xf32, #tpu.memory_space<vmem>>, vector<4x32xf32>
    tpu.vector_store %arg6[%c0_16, %c361], %18 {strides = array<i32>} : memref<4x1280xf32, #tpu.memory_space<vmem>>, vector<4x32xf32>,
    %21 = vector.extract_strided_slice %3 {offsets = [20, 0], sizes = [4, 32], strides = [1, 1]} : vector<64x32xf32> to vector<4x32xf32>
    %c0_17 = arith.constant 0 : index
    %c397 = arith.constant 397 : index
    %22 = vector.load %arg6[%c0_17, %c397] : memref<4x1280xf32, #tpu.memory_space<vmem>>, vector<4x32xf32>
    tpu.vector_store %arg6[%c0_17, %c397], %21 {strides = array<i32>} : memref<4x1280xf32, #tpu.memory_space<vmem>>, vector<4x32xf32>,
    %c0_18 = arith.constant 0 : index
    %c433 = arith.constant 433 : index
    %23 = vector.load %arg6[%c0_18, %c433] : memref<4x1280xf32, #tpu.memory_space<vmem>>, vector<4x32xf32>
    tpu.vector_store %arg6[%c0_18, %c433], %21 {strides = array<i32>} : memref<4x1280xf32, #tpu.memory_space<vmem>>, vector<4x32xf32>,
    %24 = vector.extract_strided_slice %3 {offsets = [24, 0], sizes = [4, 32], strides = [1, 1]} : vector<64x32xf32> to vector<4x32xf32>
    %c0_19 = arith.constant 0 : index
    %c469 = arith.constant 469 : index
    %25 = vector.load %arg6[%c0_19, %c469] : memref<4x1280xf32, #tpu.memory_space<vmem>>, vector<4x32xf32>
    tpu.vector_store %arg6[%c0_19, %c469], %24 {strides = array<i32>} : memref<4x1280xf32, #tpu.memory_space<vmem>>, vector<4x32xf32>,
    %c0_20 = arith.constant 0 : index
    %c505 = arith.constant 505 : index
    %26 = vector.load %arg6[%c0_20, %c505] : memref<4x1280xf32, #tpu.memory_space<vmem>>, vector<4x32xf32>
    tpu.vector_store %arg6[%c0_20, %c505], %24 {strides = array<i32>} : memref<4x1280xf32, #tpu.memory_space<vmem>>, vector<4x32xf32>,
    %27 = vector.extract_strided_slice %3 {offsets = [28, 0], sizes = [4, 32], strides = [1, 1]} : vector<64x32xf32> to vector<4x32xf32>
    %c0_21 = arith.constant 0 : index
    %c541 = arith.constant 541 : index
    %28 = vector.load %arg6[%c0_21, %c541] : memref<4x1280xf32, #tpu.memory_space<vmem>>, vector<4x32xf32>
    tpu.vector_store %arg6[%c0_21, %c541], %27 {strides = array<i32>} : memref<4x1280xf32, #tpu.memory_space<vmem>>, vector<4x32xf32>,
    %c0_22 = arith.constant 0 : index
    %c577 = arith.constant 577 : index
    %29 = vector.load %arg6[%c0_22, %c577] : memref<4x1280xf32, #tpu.memory_space<vmem>>, vector<4x32xf32>
    tpu.vector_store %arg6[%c0_22, %c577], %27 {strides = array<i32>} : memref<4x1280xf32, #tpu.memory_space<vmem>>, vector<4x32xf32>,
    %30 = vector.extract_strided_slice %3 {offsets = [32, 0], sizes = [4, 32], strides = [1, 1]} : vector<64x32xf32> to vector<4x32xf32>
    %c0_23 = arith.constant 0 : index
    %c613 = arith.constant 613 : index
    %31 = vector.load %arg6[%c0_23, %c613] : memref<4x1280xf32, #tpu.memory_space<vmem>>, vector<4x32xf32>
    tpu.vector_store %arg6[%c0_23, %c613], %30 {strides = array<i32>} : memref<4x1280xf32, #tpu.memory_space<vmem>>, vector<4x32xf32>,
    %c0_24 = arith.constant 0 : index
    %c649 = arith.constant 649 : index
    %32 = vector.load %arg6[%c0_24, %c649] : memref<4x1280xf32, #tpu.memory_space<vmem>>, vector<4x32xf32>
    tpu.vector_store %arg6[%c0_24, %c649], %30 {strides = array<i32>} : memref<4x1280xf32, #tpu.memory_space<vmem>>, vector<4x32xf32>,
    %33 = vector.extract_strided_slice %3 {offsets = [36, 0], sizes = [4, 32], strides = [1, 1]} : vector<64x32xf32> to vector<4x32xf32>
    %c0_25 = arith.constant 0 : index
    %c685 = arith.constant 685 : index
    %34 = vector.load %arg6[%c0_25, %c685] : memref<4x1280xf32, #tpu.memory_space<vmem>>, vector<4x32xf32>
    tpu.vector_store %arg6[%c0_25, %c685], %33 {strides = array<i32>} : memref<4x1280xf32, #tpu.memory_space<vmem>>, vector<4x32xf32>,
    %c0_26 = arith.constant 0 : index
    %c721 = arith.constant 721 : index
    %35 = vector.load %arg6[%c0_26, %c721] : memref<4x1280xf32, #tpu.memory_space<vmem>>, vector<4x32xf32>
    tpu.vector_store %arg6[%c0_26, %c721], %33 {strides = array<i32>} : memref<4x1280xf32, #tpu.memory_space<vmem>>, vector<4x32xf32>,
    %36 = vector.extract_strided_slice %3 {offsets = [40, 0], sizes = [4, 32], strides = [1, 1]} : vector<64x32xf32> to vector<4x32xf32>
    %c0_27 = arith.constant 0 : index
    %c757 = arith.constant 757 : index
    %37 = vector.load %arg6[%c0_27, %c757] : memref<4x1280xf32, #tpu.memory_space<vmem>>, vector<4x32xf32>
    tpu.vector_store %arg6[%c0_27, %c757], %36 {strides = array<i32>} : memref<4x1280xf32, #tpu.memory_space<vmem>>, vector<4x32xf32>,
    %c0_28 = arith.constant 0 : index
    %c793 = arith.constant 793 : index
    %38 = vector.load %arg6[%c0_28, %c793] : memref<4x1280xf32, #tpu.memory_space<vmem>>, vector<4x32xf32>
    tpu.vector_store %arg6[%c0_28, %c793], %36 {strides = array<i32>} : memref<4x1280xf32, #tpu.memory_space<vmem>>, vector<4x32xf32>,
    %39 = vector.extract_strided_slice %3 {offsets = [44, 0], sizes = [4, 32], strides = [1, 1]} : vector<64x32xf32> to vector<4x32xf32>
    %c0_29 = arith.constant 0 : index
    %c829 = arith.constant 829 : index
    %40 = vector.load %arg6[%c0_29, %c829] : memref<4x1280xf32, #tpu.memory_space<vmem>>, vector<4x32xf32>
    tpu.vector_store %arg6[%c0_29, %c829], %39 {strides = array<i32>} : memref<4x1280xf32, #tpu.memory_space<vmem>>, vector<4x32xf32>,
    %c0_30 = arith.constant 0 : index
    %c865 = arith.constant 865 : index
    %41 = vector.load %arg6[%c0_30, %c865] : memref<4x1280xf32, #tpu.memory_space<vmem>>, vector<4x32xf32>
    tpu.vector_store %arg6[%c0_30, %c865], %39 {strides = array<i32>} : memref<4x1280xf32, #tpu.memory_space<vmem>>, vector<4x32xf32>,
    %42 = vector.extract_strided_slice %3 {offsets = [48, 0], sizes = [4, 32], strides = [1, 1]} : vector<64x32xf32> to vector<4x32xf32>
    %c0_31 = arith.constant 0 : index
    %c901 = arith.constant 901 : index
    %43 = vector.load %arg6[%c0_31, %c901] : memref<4x1280xf32, #tpu.memory_space<vmem>>, vector<4x32xf32>
    tpu.vector_store %arg6[%c0_31, %c901], %42 {strides = array<i32>} : memref<4x1280xf32, #tpu.memory_space<vmem>>, vector<4x32xf32>,
    %c0_32 = arith.constant 0 : index
    %c937 = arith.constant 937 : index
    %44 = vector.load %arg6[%c0_32, %c937] : memref<4x1280xf32, #tpu.memory_space<vmem>>, vector<4x32xf32>
    tpu.vector_store %arg6[%c0_32, %c937], %42 {strides = array<i32>} : memref<4x1280xf32, #tpu.memory_space<vmem>>, vector<4x32xf32>,
    %45 = vector.extract_strided_slice %3 {offsets = [52, 0], sizes = [4, 32], strides = [1, 1]} : vector<64x32xf32> to vector<4x32xf32>
    %c0_33 = arith.constant 0 : index
    %c973 = arith.constant 973 : index
    %46 = vector.load %arg6[%c0_33, %c973] : memref<4x1280xf32, #tpu.memory_space<vmem>>, vector<4x32xf32>
    tpu.vector_store %arg6[%c0_33, %c973], %45 {strides = array<i32>} : memref<4x1280xf32, #tpu.memory_space<vmem>>, vector<4x32xf32>,
    %c0_34 = arith.constant 0 : index
    %c1009 = arith.constant 1009 : index
    %47 = vector.load %arg6[%c0_34, %c1009] : memref<4x1280xf32, #tpu.memory_space<vmem>>, vector<4x32xf32>
    tpu.vector_store %arg6[%c0_34, %c1009], %45 {strides = array<i32>} : memref<4x1280xf32, #tpu.memory_space<vmem>>, vector<4x32xf32>,
    %48 = vector.extract_strided_slice %3 {offsets = [56, 0], sizes = [4, 32], strides = [1, 1]} : vector<64x32xf32> to vector<4x32xf32>
    %c0_35 = arith.constant 0 : index
    %c1045 = arith.constant 1045 : index
    %49 = vector.load %arg6[%c0_35, %c1045] : memref<4x1280xf32, #tpu.memory_space<vmem>>, vector<4x32xf32>
    tpu.vector_store %arg6[%c0_35, %c1045], %48 {strides = array<i32>} : memref<4x1280xf32, #tpu.memory_space<vmem>>, vector<4x32xf32>,
    %c0_36 = arith.constant 0 : index
    %c1081 = arith.constant 1081 : index
    %50 = vector.load %arg6[%c0_36, %c1081] : memref<4x1280xf32, #tpu.memory_space<vmem>>, vector<4x32xf32>
    tpu.vector_store %arg6[%c0_36, %c1081], %48 {strides = array<i32>} : memref<4x1280xf32, #tpu.memory_space<vmem>>, vector<4x32xf32>,
    %51 = vector.extract_strided_slice %3 {offsets = [60, 0], sizes = [4, 32], strides = [1, 1]} : vector<64x32xf32> to vector<4x32xf32>
    %c0_37 = arith.constant 0 : index
    %c1117 = arith.constant 1117 : index
    %52 = vector.load %arg6[%c0_37, %c1117] : memref<4x1280xf32, #tpu.memory_space<vmem>>, vector<4x32xf32>
    tpu.vector_store %arg6[%c0_37, %c1117], %51 {strides = array<i32>} : memref<4x1280xf32, #tpu.memory_space<vmem>>, vector<4x32xf32>,
    %c0_38 = arith.constant 0 : index
    %c1153 = arith.constant 1153 : index
    %53 = vector.load %arg6[%c0_38, %c1153] : memref<4x1280xf32, #tpu.memory_space<vmem>>, vector<4x32xf32>
    tpu.vector_store %arg6[%c0_38, %c1153], %51 {strides = array<i32>} : memref<4x1280xf32, #tpu.memory_space<vmem>>, vector<4x32xf32>,
    %c0_39 = arith.constant 0 : index
    %c0_40 = arith.constant 0 : index
    %54 = vector.load %arg6[%c0_39, %c0_40] : memref<4x1280xf32, #tpu.memory_space<vmem>>, vector<4x1280xf32>
    %55 = vector.extract_strided_slice %54 {offsets = [0, 0], sizes = [4, 1152], strides = [1, 1]} : vector<4x1280xf32> to vector<4x1152xf32>
    %c0_41 = arith.constant 0 : index
    %c0_42 = arith.constant 0 : index
    %56 = vector.load %arg7[%c0_41, %c0_42] : memref<36x1152xf32, #tpu.memory_space<vmem>>, vector<4x1152xf32>
    tpu.vector_store %arg7[%c0_41, %c0_42], %55 {strides = array<i32>} : memref<36x1152xf32, #tpu.memory_space<vmem>>, vector<4x1152xf32>,
    %57 = vector.extract_strided_slice %54 {offsets = [0, 1], sizes = [4, 1152], strides = [1, 1]} : vector<4x1280xf32> to vector<4x1152xf32>
    %c4 = arith.constant 4 : index
    %c0_43 = arith.constant 0 : index
    %58 = vector.load %arg7[%c4, %c0_43] : memref<36x1152xf32, #tpu.memory_space<vmem>>, vector<4x1152xf32>
    tpu.vector_store %arg7[%c4, %c0_43], %57 {strides = array<i32>} : memref<36x1152xf32, #tpu.memory_space<vmem>>, vector<4x1152xf32>,
    %59 = vector.extract_strided_slice %54 {offsets = [0, 2], sizes = [4, 1152], strides = [1, 1]} : vector<4x1280xf32> to vector<4x1152xf32>
    %c8 = arith.constant 8 : index
    %c0_44 = arith.constant 0 : index
    %60 = vector.load %arg7[%c8, %c0_44] : memref<36x1152xf32, #tpu.memory_space<vmem>>, vector<4x1152xf32>
    tpu.vector_store %arg7[%c8, %c0_44], %59 {strides = array<i32>} : memref<36x1152xf32, #tpu.memory_space<vmem>>, vector<4x1152xf32>,
    %61 = vector.extract_strided_slice %54 {offsets = [0, 36], sizes = [4, 1152], strides = [1, 1]} : vector<4x1280xf32> to vector<4x1152xf32>
    %c12 = arith.constant 12 : index
    %c0_45 = arith.constant 0 : index
    %62 = vector.load %arg7[%c12, %c0_45] : memref<36x1152xf32, #tpu.memory_space<vmem>>, vector<4x1152xf32>
    tpu.vector_store %arg7[%c12, %c0_45], %61 {strides = array<i32>} : memref<36x1152xf32, #tpu.memory_space<vmem>>, vector<4x1152xf32>,
    %63 = vector.extract_strided_slice %54 {offsets = [0, 37], sizes = [4, 1152], strides = [1, 1]} : vector<4x1280xf32> to vector<4x1152xf32>
    %c16 = arith.constant 16 : index
    %c0_46 = arith.constant 0 : index
    %64 = vector.load %arg7[%c16, %c0_46] : memref<36x1152xf32, #tpu.memory_space<vmem>>, vector<4x1152xf32>
    tpu.vector_store %arg7[%c16, %c0_46], %63 {strides = array<i32>} : memref<36x1152xf32, #tpu.memory_space<vmem>>, vector<4x1152xf32>,
    %65 = vector.extract_strided_slice %54 {offsets = [0, 38], sizes = [4, 1152], strides = [1, 1]} : vector<4x1280xf32> to vector<4x1152xf32>
    %c20 = arith.constant 20 : index
    %c0_47 = arith.constant 0 : index
    %66 = vector.load %arg7[%c20, %c0_47] : memref<36x1152xf32, #tpu.memory_space<vmem>>, vector<4x1152xf32>
    tpu.vector_store %arg7[%c20, %c0_47], %65 {strides = array<i32>} : memref<36x1152xf32, #tpu.memory_space<vmem>>, vector<4x1152xf32>,
    %67 = vector.extract_strided_slice %54 {offsets = [0, 72], sizes = [4, 1152], strides = [1, 1]} : vector<4x1280xf32> to vector<4x1152xf32>
    %c24 = arith.constant 24 : index
    %c0_48 = arith.constant 0 : index
    %68 = vector.load %arg7[%c24, %c0_48] : memref<36x1152xf32, #tpu.memory_space<vmem>>, vector<4x1152xf32>
    tpu.vector_store %arg7[%c24, %c0_48], %67 {strides = array<i32>} : memref<36x1152xf32, #tpu.memory_space<vmem>>, vector<4x1152xf32>,
    %69 = vector.extract_strided_slice %54 {offsets = [0, 73], sizes = [4, 1152], strides = [1, 1]} : vector<4x1280xf32> to vector<4x1152xf32>
    %c28 = arith.constant 28 : index
    %c0_49 = arith.constant 0 : index
    %70 = vector.load %arg7[%c28, %c0_49] : memref<36x1152xf32, #tpu.memory_space<vmem>>, vector<4x1152xf32>
    tpu.vector_store %arg7[%c28, %c0_49], %69 {strides = array<i32>} : memref<36x1152xf32, #tpu.memory_space<vmem>>, vector<4x1152xf32>,
    %71 = vector.extract_strided_slice %54 {offsets = [0, 74], sizes = [4, 1152], strides = [1, 1]} : vector<4x1280xf32> to vector<4x1152xf32>
    %c32 = arith.constant 32 : index
    %c0_50 = arith.constant 0 : index
    %72 = vector.load %arg7[%c32, %c0_50] : memref<36x1152xf32, #tpu.memory_space<vmem>>, vector<4x1152xf32>
    tpu.vector_store %arg7[%c32, %c0_50], %71 {strides = array<i32>} : memref<36x1152xf32, #tpu.memory_space<vmem>>, vector<4x1152xf32>,
    %c0_51 = arith.constant 0 : index
    %c0_52 = arith.constant 0 : index
    %73 = vector.load %arg3[%c0_51, %c0_52] : memref<4x36xf32, #tpu.memory_space<vmem>>, vector<4x36xf32>
    %c0_53 = arith.constant 0 : index
    %c0_54 = arith.constant 0 : index
    %74 = vector.load %arg7[%c0_53, %c0_54] : memref<36x1152xf32, #tpu.memory_space<vmem>>, vector<36x1152xf32>
    %cst_55 = arith.constant dense<0.000000e+00> : vector<4x1152xf32>
    %75 = tpu.matmul %73, %74, %cst_55 {dimension_numbers = #tpu.dot_dimension_numbers<[1], [0], [0], [1], [0, 0, 1, 1], [], []>} : vector<4x36xf32>, vector<36x1152xf32>, vector<4x1152xf32> -> vector<4x1152xf32>
    %c0_56 = arith.constant 0 : index
    %c0_57 = arith.constant 0 : index
    %76 = vector.load %arg4[%c0_56, %c0_57] : memref<4x1xf32, #tpu.memory_space<vmem>>, vector<4x1xf32>
    %77 = vector.broadcast %76 : vector<4x1xf32> to vector<4x1152xf32>
    %78 = arith.addf %75, %77 : vector<4x1152xf32>
    %cst_58 = arith.constant 0.000000e+00 : f32
    %79 = vector.broadcast %cst_58 : f32 to vector<4x1152xf32>
    %80 = arith.cmpf oge, %78, %79 : vector<4x1152xf32>
    %cst_59 = arith.constant 2.000000e-01 : f32
    %81 = vector.broadcast %cst_59 : f32 to vector<4x1152xf32>
    %82 = arith.mulf %81, %78 : vector<4x1152xf32>
    %83 = arith.select %80, %78, %82 : vector<4x1152xi1>, vector<4x1152xf32>
    %c0_60 = arith.constant 0 : index
    %c0_61 = arith.constant 0 : index
    %c0_62 = arith.constant 0 : index
    %84 = vector.load %arg5[%c0_60, %c0_61, %c0_62] : memref<1x4x1152xf32, #tpu.memory_space<vmem>>, vector<1x4x1152xf32>
    %85 = vector.shape_cast %84 : vector<1x4x1152xf32> to vector<4x1152xf32>
    %86 = vector.shape_cast %83 : vector<4x1152xf32> to vector<1x4x1152xf32>
    tpu.vector_store %arg5[%c0_60, %c0_61, %c0_62], %86 {strides = array<i32>} : memref<1x4x1152xf32, #tpu.memory_space<vmem>>, vector<1x4x1152xf32>,
    return
  }
  func.func @transform_0(%arg0: i32) -> (i32, i32, i32) {
    %c0_i32 = arith.constant 0 : i32
    %c0_i32_0 = arith.constant 0 : i32
    %c0_i32_1 = arith.constant 0 : i32
    return %arg0, %c0_i32, %c0_i32_0 : i32, i32, i32
  }
  func.func @transform_1(%arg0: i32) -> (i32, i32) {
    %c0_i32 = arith.constant 0 : i32
    %c0_i32_0 = arith.constant 0 : i32
    %c0_i32_1 = arith.constant 0 : i32
    return %c0_i32, %c0_i32_0 : i32, i32
  }
  func.func @transform_2(%arg0: i32) -> (i32, i32) {
    %c0_i32 = arith.constant 0 : i32
    %c0_i32_0 = arith.constant 0 : i32
    %c0_i32_1 = arith.constant 0 : i32
    return %c0_i32, %c0_i32_0 : i32, i32
  }
  func.func @transform_3(%arg0: i32) -> (i32, i32) {
    %c0_i32 = arith.constant 0 : i32
    %c0_i32_0 = arith.constant 0 : i32
    %c0_i32_1 = arith.constant 0 : i32
    return %c0_i32, %c0_i32_0 : i32, i32
  }
  func.func @transform_4(%arg0: i32) -> (i32, i32, i32) {
    %c0_i32 = arith.constant 0 : i32
    %c0_i32_0 = arith.constant 0 : i32
    %c0_i32_1 = arith.constant 0 : i32
    return %arg0, %c0_i32, %c0_i32_0 : i32, i32, i32
  }
}

</mosaic_0001>

<llo_original>
// kernel: tpu_custom_call.1
$region0: #{tpu_custom_call.1}
  #allocation0 [shape = 'u32[]', space=smem, size = 0x4, offset = 0x4, fixed_abs, tag = 'smem constant byte address 0x4 - core index']
  #allocation1 [shape = 'u32[144,128]{1,0:T(1,128)}', space=vmem, size = 0x12000, scoped, tag = 'internal scratch']
  #allocation2 [shape = 'f32[4,1280]{1,0:T(4,128)}', space=vmem, size = 0x5000, scoped, tag = 'scratch operand']
  #allocation3 [shape = 'f32[36,1152]{1,0:T(8,128)}', space=vmem, size = 0x2d000, scoped, tag = 'scratch operand']
  %s0 = inlined_call_operand.vmem [shape: f32[2,64,16], index: 0, kind: input, shape index: {}]
  %s1 = inlined_call_operand.vmem [shape: f32[16,32], index: 1, kind: input, shape index: {}]
  %s2 = inlined_call_operand.vmem [shape: f32[4,36], index: 2, kind: input, shape index: {}]
  %s3 = inlined_call_operand.vmem [shape: f32[4,1], index: 3, kind: input, shape index: {}]
  %s4 = inlined_call_operand.hbm [shape: f32[2,4,1152], index: 4, kind: output, shape index: {}]
  %s5 = sld [smem:[#allocation0]]
  $region49: #{tpu_custom_call.1} parent=0
    _
  %s7 = ssub.s32 1, %s5
  %s8 = scalar_select 0, %s7, %s5
  $region1: #{tpu_custom_call.1} parent=0
    #allocation4 [shape = 'u8[36864]{0}', space=vmem, size = 0x9000, scoped, tag = 'output window, operand 0']
    #allocation5 [shape = 's32[2]{0}', space=sflag, size = 0x8, scoped, tag = 'scoped memory for tpu_custom_call.1']
    %9 = vsyncpa [#allocation5], 0
    %s10 = scalar_lea.sflag [#allocation5], 1
    %11 = vsyncpa %s10, 0
    loop: start=0, step=1, limit=4
    $region2: #{tpu_custom_call.1} parent=1 // loop_pre_header
      _
    $region3: #{tpu_custom_call.1} parent=1 // loop_header
      %s13 = sphi 0, %s17
      %p14 = scmp.ge.s32.totalorder %s13, 4
      %s23 = sphi 0, %s25
      %s26 = sphi 0, %s23
      %s27 = sphi 0, %s26
      %s43 = sphi 0, %s27
      %s47 = sphi 0, %s47
      %s49 = sphi 0, %s47
      %s50 = sphi 0, %s49
      %s64 = sphi 0, %s50
      %s68 = sphi 0, %s68
      %s70 = sphi 0, %s68
      %s71 = sphi 0, %s70
      %s85 = sphi 0, %s71
      %s89 = sphi 0, %s89
      %s91 = sphi 0, %s89
      %s92 = sphi 0, %s91
      %s106 = sphi 0, %s92
      %s112 = sphi 0, %s114
      %s115 = sphi 0, %s112
      %s116 = sphi 0, %s115
      %s132 = sphi 0, %s116
    $region4: #{tpu_custom_call.1} parent=1 // loop_header_branch
      %16 = sbr.rel (%p14) target = $region8
    $region5: #{tpu_custom_call.1} parent=1 // loop_body
      %s18 = ssub.s32 %s13, 1
      %s19 = ssub.s32 %s13, 2
      %s20 = sadd.s32 %s13, 1
      %s21 = ssub.s32 %s13, %s20
      %p22 = scmp.eq.s32.totalorder %s21, 0
      %s24 = sadd.s32 %s23, 1
      %s25 = scalar_select %p22, %s23, %s24
      %p28 = pneg %p22
      %p29 = scmp.eq.s32.totalorder %s13, 1
      %p30 = por %p28, %p29
      %p31 = scmp.ne.s32.totalorder %s23, %s26
      %p32 = scmp.eq.s32.totalorder %s13, 0
      %p33 = por %p31, %p32
      %p34 = scmp.ne.s32.totalorder %s23, %s26
      %p35 = scmp.eq.s32.totalorder %s18, 1
      %p36 = por %p34, %p35
      %p37 = scmp.ne.s32.totalorder %s26, %s27
      %p38 = scmp.eq.s32.totalorder %s18, 0
      %p39 = por %p37, %p38
      %p40 = scmp.ne.s32.totalorder %s26, %s27
      %p41 = scmp.eq.s32.totalorder %s19, 1
      %p42 = por %p40, %p41
      %p44 = scmp.ne.s32.totalorder %s27, %s43
      %p45 = scmp.eq.s32.totalorder %s19, 0
      %p46 = por %p44, %p45
      %s48 = sadd.s32 %s47, 1
      %p51 = scmp.eq.s32.totalorder %s13, 1
      %p52 = scmp.ne.s32.totalorder %s47, %s49
      %p53 = scmp.eq.s32.totalorder %s13, 0
      %p54 = por %p52, %p53
      %p55 = scmp.ne.s32.totalorder %s47, %s49
      %p56 = scmp.eq.s32.totalorder %s18, 1
      %p57 = por %p55, %p56
      %p58 = scmp.ne.s32.totalorder %s49, %s50
      %p59 = scmp.eq.s32.totalorder %s18, 0
      %p60 = por %p58, %p59
      %p61 = scmp.ne.s32.totalorder %s49, %s50
      %p62 = scmp.eq.s32.totalorder %s19, 1
      %p63 = por %p61, %p62
      %p65 = scmp.ne.s32.totalorder %s50, %s64
      %p66 = scmp.eq.s32.totalorder %s19, 0
      %p67 = por %p65, %p66
      %s69 = sadd.s32 %s68, 1
      %p72 = scmp.eq.s32.totalorder %s13, 1
      %p73 = scmp.ne.s32.totalorder %s68, %s70
      %p74 = scmp.eq.s32.totalorder %s13, 0
      %p75 = por %p73, %p74
      %p76 = scmp.ne.s32.totalorder %s68, %s70
      %p77 = scmp.eq.s32.totalorder %s18, 1
      %p78 = por %p76, %p77
      %p79 = scmp.ne.s32.totalorder %s70, %s71
      %p80 = scmp.eq.s32.totalorder %s18, 0
      %p81 = por %p79, %p80
      %p82 = scmp.ne.s32.totalorder %s70, %s71
      %p83 = scmp.eq.s32.totalorder %s19, 1
      %p84 = por %p82, %p83
      %p86 = scmp.ne.s32.totalorder %s71, %s85
      %p87 = scmp.eq.s32.totalorder %s19, 0
      %p88 = por %p86, %p87
      %s90 = sadd.s32 %s89, 1
      %p93 = scmp.eq.s32.totalorder %s13, 1
      %p94 = scmp.ne.s32.totalorder %s89, %s91
      %p95 = scmp.eq.s32.totalorder %s13, 0
      %p96 = por %p94, %p95
      %p97 = scmp.ne.s32.totalorder %s89, %s91
      %p98 = scmp.eq.s32.totalorder %s18, 1
      %p99 = por %p97, %p98
      %p100 = scmp.ne.s32.totalorder %s91, %s92
      %p101 = scmp.eq.s32.totalorder %s18, 0
      %p102 = por %p100, %p101
      %p103 = scmp.ne.s32.totalorder %s91, %s92
      %p104 = scmp.eq.s32.totalorder %s19, 1
      %p105 = por %p103, %p104
      %p107 = scmp.ne.s32.totalorder %s92, %s106
      %p108 = scmp.eq.s32.totalorder %s19, 0
      %p109 = por %p107, %p108
      %s110 = ssub.s32 %s13, %s20
      %p111 = scmp.eq.s32.totalorder %s110, 0
      %s113 = sadd.s32 %s112, 1
      %s114 = scalar_select %p111, %s112, %s113
      %p117 = pneg %p111
      %p118 = scmp.eq.s32.totalorder %s13, 1
      %p119 = por %p117, %p118
      %p120 = scmp.ne.s32.totalorder %s112, %s115
      %p121 = scmp.eq.s32.totalorder %s13, 0
      %p122 = por %p120, %p121
      %p123 = scmp.ne.s32.totalorder %s112, %s115
      %p124 = scmp.eq.s32.totalorder %s18, 1
      %p125 = por %p123, %p124
      %p126 = scmp.ne.s32.totalorder %s115, %s116
      %p127 = scmp.eq.s32.totalorder %s18, 0
      %p128 = por %p126, %p127
      %p129 = scmp.ne.s32.totalorder %s115, %s116
      %p130 = scmp.eq.s32.totalorder %s19, 1
      %p131 = por %p129, %p130
      %p133 = scmp.ne.s32.totalorder %s116, %s132
      %p134 = scmp.eq.s32.totalorder %s19, 0
      %p135 = por %p133, %p134
      %p136 = scmp.le.s32.totalorder 1, %s13
      %p137 = scmp.lt.s32.totalorder %s13, 3
      %p138 = pnand %p136, %p137
      %p139 = pneg %p138
      // Predicated region
      $region9: #{tpu_custom_call.1} parent=5 // pred_check
        _
      $region10: #{tpu_custom_call.1} parent=5 // pred_check_branch
        %141 = sbr.rel (%p138) target = $region12
      $region11: #{tpu_custom_call.1} parent=5 // pred_region
        %s142 = ssub.s32 %s13, 1
        // Predicated region
        $region13: #{tpu_custom_call.1} parent=11 // pred_check
          %p143 = pneg %p60
        $region14: #{tpu_custom_call.1} parent=11 // pred_check_branch
          %145 = sbr.rel (%p143) target = $region16
        $region15: #{tpu_custom_call.1} parent=11 // pred_region
          _
        $region16: #{tpu_custom_call.1} parent=11 // pred_fallthru
          _
        // Predicated region
        $region17: #{tpu_custom_call.1} parent=11 // pred_check
          %p146 = pneg %p81
        $region18: #{tpu_custom_call.1} parent=11 // pred_check_branch
          %148 = sbr.rel (%p146) target = $region20
        $region19: #{tpu_custom_call.1} parent=11 // pred_region
          _
        $region20: #{tpu_custom_call.1} parent=11 // pred_fallthru
          _
        // Predicated region
        $region21: #{tpu_custom_call.1} parent=11 // pred_check
          %p149 = pneg %p102
        $region22: #{tpu_custom_call.1} parent=11 // pred_check_branch
          %151 = sbr.rel (%p149) target = $region24
        $region23: #{tpu_custom_call.1} parent=11 // pred_region
          _
        $region24: #{tpu_custom_call.1} parent=11 // pred_fallthru
          _
      $region12: #{tpu_custom_call.1} parent=5 // pred_fallthru
        _
      %p152 = scmp.lt.s32.totalorder %s13, 2
      // Predicated region
      $region25: #{tpu_custom_call.1} parent=5 // pred_check
        %p153 = pneg %p152
      $region26: #{tpu_custom_call.1} parent=5 // pred_check_branch
        %155 = sbr.rel (%p153) target = $region28
      $region27: #{tpu_custom_call.1} parent=5 // pred_region
        // Predicated region
        $region29: #{tpu_custom_call.1} parent=27 // pred_check
          %p156 = pneg %p33
        $region30: #{tpu_custom_call.1} parent=27 // pred_check_branch
          %158 = sbr.rel (%p156) target = $region32
        $region31: #{tpu_custom_call.1} parent=27 // pred_region
          %p159 = scmp.lt.s32.totalorder %s13, 1
          %s160 = scalar_select %p159, %s13, 1
          %s161 = smul.addr %s160, 8
          %s162 = smul.addr %s161, 8
          %s163 = scalar_lea.vmem %s0, %s162
        $region32: #{tpu_custom_call.1} parent=27 // pred_fallthru
          _
      $region28: #{tpu_custom_call.1} parent=5 // pred_fallthru
        _
      %p164 = scmp.le.s32.totalorder 1, %s13
      %p165 = scmp.lt.s32.totalorder %s13, 3
      %p166 = pnand %p164, %p165
      %p167 = pneg %p166
      // Predicated region
      $region33: #{tpu_custom_call.1} parent=5 // pred_check
        _
      $region34: #{tpu_custom_call.1} parent=5 // pred_check_branch
        %169 = sbr.rel (%p166) target = $region36
      $region35: #{tpu_custom_call.1} parent=5 // pred_region
        %s170 = ssub.s32 %s13, 1
        %p171 = scmp.lt.s32.totalorder %s18, 1
        %s172 = scalar_select %p171, %s18, 1
        %s173 = smul.addr %s172, 8
        %s174 = smul.addr %s173, 8
        %s175 = scalar_lea.vmem %s0, %s174
        %p176 = pneg %p39
        %p177 = pneg %p36
        %p178 = pneg %p60
        %p179 = pneg %p57
        %p180 = pneg %p81
        %p181 = pneg %p78
        %p182 = pneg %p102
        %p183 = pneg %p99
        %p184 = pneg %p128
        %p185 = pneg %p125
        %s186 = sand.u32 %s115, 1
        %s187 = scalar_lea.sflag [#allocation5], %s186
        %s188 = sand.u32 %s115, 1
        %s189 = smul.addr %s188, 36
        %s190 = scalar_lea.vmem [#allocation4], %s189
        %p191 = scmp.lt.s32.totalorder %s18, 1
        %s192 = scalar_select %p191, %s18, 1
        %s193 = smul.addr %s192, 8
        %s194 = smul.addr %s193, 8
        %s195 = scalar_lea.vmem %s0, %s194
        %v196 = vld [vmem:[%s195] sm:$0xff]
        %v197 = vld [vmem:[%s195 + $0x8] sm:$0xff]
        %v198 = vld [vmem:[%s195 + $0x10] sm:$0xff]
        %v199 = vld [vmem:[%s195 + $0x18] sm:$0xff]
        %v200 = vld [vmem:[%s195 + $0x20] sm:$0xff]
        %v201 = vld [vmem:[%s195 + $0x28] sm:$0xff]
        %v202 = vld [vmem:[%s195 + $0x30] sm:$0xff]
        %v203 = vld [vmem:[%s195 + $0x38] sm:$0xff]
        %v204 = vld [vmem:[%s1] sm:$0xff]
        %v205 = vld [vmem:[%s1 + $0x8] sm:$0xff]
        %vm206 = vcmask 130048
        %v208 = vsel %vm206, %v196, 0
        %v211 = vsel %vm206, %v197, 0
        %v214 = vsel %vm206, %v198, 0
        %v217 = vsel %vm206, %v199, 0
        %v220 = vsel %vm206, %v200, 0
        %v223 = vsel %vm206, %v201, 0
        %v226 = vsel %vm206, %v202, 0
        %v229 = vsel %vm206, %v203, 0
        %231 = vmatprep.subr.mxu0 0.0
        %232 = vmatpush1.msra.mxu0 %v204
        %233 = vmatprep.subr.mxu0 0.0
        %234 = vmatpush1.msra.mxu0 %v205
        %235 = vmatprep.subr.mxu0 0.0
        %236 = vmatpush1.msra.mxu0 0.0
        %237 = vmatprep.subr.mxu0 0.0
        %238 = vmatpush1.msra.mxu0 0.0
        %239 = vmatprep.subr.mxu0 0.0
        %240 = vmatpush1.msra.mxu0 0.0
        %241 = vmatprep.subr.mxu0 0.0
        %242 = vmatpush1.msra.mxu0 0.0
        %243 = vmatprep.subr.mxu0 0.0
        %244 = vmatpush1.msra.mxu0 0.0
        %245 = vmatprep.subr.mxu0 0.0
        %246 = vmatpush1.msra.mxu0 0.0
        %247 = vmatprep.subr.mxu0 0.0
        %248 = vmatpush1.msra.mxu0 0.0
        %249 = vmatprep.subr.mxu0 0.0
        %250 = vmatpush1.msra.mxu0 0.0
        %251 = vmatprep.subr.mxu0 0.0
        %252 = vmatpush1.msra.mxu0 0.0
        %253 = vmatprep.subr.mxu0 0.0
        %254 = vmatpush1.msra.mxu0 0.0
        %255 = vmatprep.subr.mxu0 0.0
        %256 = vmatpush1.msra.mxu0 0.0
        %257 = vmatprep.subr.mxu0 0.0
        %258 = vmatpush1.msra.mxu0 0.0
        %259 = vmatprep.subr.mxu0 0.0
        %260 = vmatpush1.msra.mxu0 0.0
        %261 = vmatprep.subr.mxu0 0.0
        %262 = vmatpush1.msra.mxu0 0.0
        %263 = vmatprep.subr.mxu0 0.0
        %264 = vmatpush1.msra.mxu0 0.0
        %265 = vmatprep.subr.mxu0 0.0
        %266 = vmatpush1.msra.mxu0 0.0
        %267 = vmatprep.subr.mxu0 0.0
        %268 = vmatpush1.msra.mxu0 0.0
        %269 = vmatprep.subr.mxu0 0.0
        %270 = vmatpush1.msra.mxu0 0.0
        %271 = vmatprep.subr.mxu0 0.0
        %272 = vmatpush1.msra.mxu0 0.0
        %273 = vmatprep.subr.mxu0 0.0
        %274 = vmatpush1.msra.mxu0 0.0
        %275 = vmatprep.subr.mxu0 0.0
        %276 = vmatpush1.msra.mxu0 0.0
        %277 = vmatprep.subr.mxu0 0.0
        %278 = vmatpush1.msra.mxu0 0.0
        %279 = vmatprep.subr.mxu0 0.0
        %280 = vmatpush1.msra.mxu0 0.0
        %281 = vmatprep.subr.mxu0 0.0
        %282 = vmatpush1.msra.mxu0 0.0
        %283 = vmatprep.subr.mxu0 0.0
        %284 = vmatpush1.msra.mxu0 0.0
        %285 = vmatprep.subr.mxu0 0.0
        %286 = vmatpush1.msra.mxu0 0.0
        %287 = vmatprep.subr.mxu0 0.0
        %288 = vmatpush1.msra.mxu0 0.0
        %289 = vmatprep.subr.mxu0 0.0
        %290 = vmatpush1.msra.mxu0 0.0
        %291 = vmatprep.subr.mxu0 0.0
        %292 = vmatpush1.msra.mxu0 0.0
        %293 = vmatprep.subr.mxu0 0.0
        %294 = vmatpush1.msra.mxu0 0.0
        %295 = vmatprep.mubr.f32.mxu0 0.0
        %296 = vmatmul.mubr.f32.gmra.mrb[0].mxu0 %v208
        %v297 = vpop.f32.mrb[0].mxu0
        %v298 = vadd.f32 0.0, %v297
        %v299 = vpop.f32.mrb[0].mxu0
        %300 = vmatprep.mubr.f32.mxu0 0.0
        %301 = vmatmul.mubr.f32.gmra.mrb[0].mxu0 %v211
        %v302 = vpop.f32.mrb[0].mxu0
        %v303 = vadd.f32 0.0, %v302
        %v304 = vpop.f32.mrb[0].mxu0
        %305 = vmatprep.mubr.f32.mxu0 0.0
        %306 = vmatmul.mubr.f32.gmra.mrb[0].mxu0 %v214
        %v307 = vpop.f32.mrb[0].mxu0
        %v308 = vadd.f32 0.0, %v307
        %v309 = vpop.f32.mrb[0].mxu0
        %310 = vmatprep.mubr.f32.mxu0 0.0
        %311 = vmatmul.mubr.f32.gmra.mrb[0].mxu0 %v217
        %v312 = vpop.f32.mrb[0].mxu0
        %v313 = vadd.f32 0.0, %v312
        %v314 = vpop.f32.mrb[0].mxu0
        %315 = vmatprep.mubr.f32.mxu0 0.0
        %316 = vmatmul.mubr.f32.gmra.mrb[0].mxu0 %v220
        %v317 = vpop.f32.mrb[0].mxu0
        %v318 = vadd.f32 0.0, %v317
        %v319 = vpop.f32.mrb[0].mxu0
        %320 = vmatprep.mubr.f32.mxu0 0.0
        %321 = vmatmul.mubr.f32.gmra.mrb[0].mxu0 %v223
        %v322 = vpop.f32.mrb[0].mxu0
        %v323 = vadd.f32 0.0, %v322
        %v324 = vpop.f32.mrb[0].mxu0
        %325 = vmatprep.mubr.f32.mxu0 0.0
        %326 = vmatmul.mubr.f32.gmra.mrb[0].mxu0 %v226
        %v327 = vpop.f32.mrb[0].mxu0
        %v328 = vadd.f32 0.0, %v327
        %v329 = vpop.f32.mrb[0].mxu0
        %330 = vmatprep.mubr.f32.mxu0 0.0
        %331 = vmatmul.mubr.f32.gmra.mrb[0].mxu0 %v229
        %v332 = vpop.f32.mrb[0].mxu0
        %v333 = vadd.f32 0.0, %v332
        %v334 = vpop.f32.mrb[0].mxu0
        %335 = vdwg.mxu0
        %336 = vst [vmem:[#allocation2] sm:$0xff] 0.0
        %337 = vst [vmem:[#allocation2 + $0x8] sm:$0xff] 0.0
        %338 = vst [vmem:[#allocation2 + $0x10] sm:$0xff] 0.0
        %339 = vst [vmem:[#allocation2 + $0x18] sm:$0xff] 0.0
        %340 = vst [vmem:[#allocation2 + $0x20] sm:$0xff] 0.0
        %342 = vrot.lane.b32.xlu0 %v298, 37
        %v343 = vpop.permute.xlu0 %342
        %vm345 = vcmask 560424
        %346 = vst.msk [vmem:[#allocation2] sm:$0xf] %vm345, %v343
        %347 = vrot.lane.b32.xlu0 %v298, 73
        %v348 = vpop.permute.xlu0 %347
        %vm350 = vcmask 855624
        %351 = vst.msk [vmem:[#allocation2] sm:$0xf] %vm350, %v348
        %v352 = vcombine.high %v298, %v298
        %353 = vrot.lane.b32.xlu0 %v352, 109
        %v354 = vpop.permute.xlu0 %353
        %v355 = vrot.slane %v354, 4
        %vm356 = vcmask 891904
        %v357 = vsel %vm356, %v355, %v354
        %vm359 = vcmask 1044328
        %vm360 = vcmask 105476
        %vm361 = vmor %vm360, %vm359
        %362 = vst.msk [vmem:[#allocation2] sm:$0xff] %vm361, %v357
        %363 = vrot.lane.b32.xlu0 %v352, 17
        %v364 = vpop.permute.xlu0 %363
        %vm366 = vcmask 396424
        %367 = vst.msk [vmem:[#allocation2 + $0x4] sm:$0xf] %vm366, %v364
        %369 = vrot.lane.b32.xlu0 %v303, 53
        %v370 = vpop.permute.xlu0 %369
        %vm372 = vcmask 691624
        %373 = vst.msk [vmem:[#allocation2 + $0x4] sm:$0xf] %vm372, %v370
        %374 = vrot.lane.b32.xlu0 %v303, 89
        %v375 = vpop.permute.xlu0 %374
        %vm377 = vcmask 986824
        %378 = vst.msk [vmem:[#allocation2 + $0x4] sm:$0xf] %vm377, %v375
        %v379 = vcombine.high %v303, %v303
        %380 = vrot.lane.b32.xlu0 %v379, 125
        %v381 = vpop.permute.xlu0 %380
        %v382 = vrot.slane %v381, 4
        %vm383 = vcmask 1022976
        %v384 = vsel %vm383, %v382, %v381
        %vm386 = vcmask 1044456
        %vm387 = vcmask 236548
        %vm388 = vmor %vm387, %vm386
        %389 = vst.msk [vmem:[#allocation2 + $0x4] sm:$0xff] %vm388, %v384
        %390 = vrot.lane.b32.xlu0 %v379, 33
        %v391 = vpop.permute.xlu0 %390
        %vm393 = vcmask 527624
        %394 = vst.msk [vmem:[#allocation2 + $0x8] sm:$0xf] %vm393, %v391
        %396 = vrot.lane.b32.xlu0 %v308, 69
        %v397 = vpop.permute.xlu0 %396
        %vm399 = vcmask 822824
        %400 = vst.msk [vmem:[#allocation2 + $0x8] sm:$0xf] %vm399, %v397
        %401 = vrot.lane.b32.xlu0 %v308, 105
        %v402 = vpop.permute.xlu0 %401
        %v403 = vrot.slane %v402, 4
        %vm404 = vcmask 859136
        %v405 = vsel %vm404, %v403, %v402
        %vm407 = vcmask 1044296
        %vm408 = vcmask 72708
        %vm409 = vmor %vm408, %vm407
        %410 = vst.msk [vmem:[#allocation2 + $0x8] sm:$0xff] %vm409, %v405
        %v411 = vcombine.high %v308, %v308
        %412 = vrot.lane.b32.xlu0 %v411, 13
        %v413 = vpop.permute.xlu0 %412
        %vm415 = vcmask 363624
        %416 = vst.msk [vmem:[#allocation2 + $0xc] sm:$0xf] %vm415, %v413
        %417 = vrot.lane.b32.xlu0 %v411, 49
        %v418 = vpop.permute.xlu0 %417
        %vm420 = vcmask 658824
        %421 = vst.msk [vmem:[#allocation2 + $0xc] sm:$0xf] %vm420, %v418
        %423 = vrot.lane.b32.xlu0 %v313, 85
        %v424 = vpop.permute.xlu0 %423
        %vm426 = vcmask 954024
        %427 = vst.msk [vmem:[#allocation2 + $0xc] sm:$0xf] %vm426, %v424
        %428 = vrot.lane.b32.xlu0 %v313, 121
        %v429 = vpop.permute.xlu0 %428
        %v430 = vrot.slane %v429, 4
        %vm431 = vcmask 990208
        %v432 = vsel %vm431, %v430, %v429
        %vm434 = vcmask 1044424
        %vm435 = vcmask 203780
        %vm436 = vmor %vm435, %vm434
        %437 = vst.msk [vmem:[#allocation2 + $0xc] sm:$0xff] %vm436, %v432
        %v438 = vcombine.high %v313, %v313
        %439 = vrot.lane.b32.xlu0 %v438, 29
        %v440 = vpop.permute.xlu0 %439
        %vm442 = vcmask 494824
        %443 = vst.msk [vmem:[#allocation2 + $0x10] sm:$0xf] %vm442, %v440
        %444 = vrot.lane.b32.xlu0 %v438, 65
        %v445 = vpop.permute.xlu0 %444
        %vm447 = vcmask 790024
        %448 = vst.msk [vmem:[#allocation2 + $0x10] sm:$0xf] %vm447, %v445
        %450 = vrot.lane.b32.xlu0 %v318, 101
        %v451 = vpop.permute.xlu0 %450
        %v452 = vrot.slane %v451, 4
        %vm453 = vcmask 826368
        %v454 = vsel %vm453, %v452, %v451
        %vm456 = vcmask 1044264
        %vm457 = vcmask 39940
        %vm458 = vmor %vm457, %vm456
        %459 = vst.msk [vmem:[#allocation2 + $0x10] sm:$0xff] %vm458, %v454
        %460 = vrot.lane.b32.xlu0 %v318, 9
        %v461 = vpop.permute.xlu0 %460
        %vm463 = vcmask 330824
        %464 = vst.msk [vmem:[#allocation2 + $0x14] sm:$0xf] %vm463, %v461
        %v465 = vcombine.high %v318, %v318
        %466 = vrot.lane.b32.xlu0 %v465, 45
        %v467 = vpop.permute.xlu0 %466
        %vm469 = vcmask 626024
        %470 = vst.msk [vmem:[#allocation2 + $0x14] sm:$0xf] %vm469, %v467
        %471 = vrot.lane.b32.xlu0 %v465, 81
        %v472 = vpop.permute.xlu0 %471
        %vm474 = vcmask 921224
        %475 = vst.msk [vmem:[#allocation2 + $0x14] sm:$0xf] %vm474, %v472
        %477 = vrot.lane.b32.xlu0 %v323, 117
        %v478 = vpop.permute.xlu0 %477
        %v479 = vrot.slane %v478, 4
        %vm480 = vcmask 957440
        %v481 = vsel %vm480, %v479, %v478
        %vm483 = vcmask 1044392
        %vm484 = vcmask 171012
        %vm485 = vmor %vm484, %vm483
        %486 = vst.msk [vmem:[#allocation2 + $0x14] sm:$0xff] %vm485, %v481
        %487 = vrot.lane.b32.xlu0 %v323, 25
        %v488 = vpop.permute.xlu0 %487
        %vm490 = vcmask 462024
        %491 = vst.msk [vmem:[#allocation2 + $0x18] sm:$0xf] %vm490, %v488
        %v492 = vcombine.high %v323, %v323
        %493 = vrot.lane.b32.xlu0 %v492, 61
        %v494 = vpop.permute.xlu0 %493
        %vm496 = vcmask 757224
        %497 = vst.msk [vmem:[#allocation2 + $0x18] sm:$0xf] %vm496, %v494
        %498 = vrot.lane.b32.xlu0 %v492, 97
        %v499 = vpop.permute.xlu0 %498
        %v500 = vrot.slane %v499, 4
        %vm501 = vcmask 793600
        %v502 = vsel %vm501, %v500, %v499
        %vm504 = vcmask 1044232
        %vm505 = vcmask 7172
        %vm506 = vmor %vm505, %vm504
        %507 = vst.msk [vmem:[#allocation2 + $0x18] sm:$0xff] %vm506, %v502
        %509 = vrot.lane.b32.xlu0 %v328, 5
        %v510 = vpop.permute.xlu0 %509
        %vm512 = vcmask 298024
        %513 = vst.msk [vmem:[#allocation2 + $0x1c] sm:$0xf] %vm512, %v510
        %514 = vrot.lane.b32.xlu0 %v328, 41
        %v515 = vpop.permute.xlu0 %514
        %vm517 = vcmask 593224
        %518 = vst.msk [vmem:[#allocation2 + $0x1c] sm:$0xf] %vm517, %v515
        %v519 = vcombine.high %v328, %v328
        %520 = vrot.lane.b32.xlu0 %v519, 77
        %v521 = vpop.permute.xlu0 %520
        %vm523 = vcmask 888424
        %524 = vst.msk [vmem:[#allocation2 + $0x1c] sm:$0xf] %vm523, %v521
        %525 = vrot.lane.b32.xlu0 %v519, 113
        %v526 = vpop.permute.xlu0 %525
        %v527 = vrot.slane %v526, 4
        %vm528 = vcmask 924672
        %v529 = vsel %vm528, %v527, %v526
        %vm531 = vcmask 1044360
        %vm532 = vcmask 138244
        %vm533 = vmor %vm532, %vm531
        %534 = vst.msk [vmem:[#allocation2 + $0x1c] sm:$0xff] %vm533, %v529
        %536 = vrot.lane.b32.xlu0 %v333, 21
        %v537 = vpop.permute.xlu0 %536
        %vm539 = vcmask 429224
        %540 = vst.msk [vmem:[#allocation2 + $0x20] sm:$0xf] %vm539, %v537
        %541 = vrot.lane.b32.xlu0 %v333, 57
        %v542 = vpop.permute.xlu0 %541
        %vm544 = vcmask 724424
        %545 = vst.msk [vmem:[#allocation2 + $0x20] sm:$0xf] %vm544, %v542
        %v546 = vcombine.high %v333, %v333
        %547 = vrot.lane.b32.xlu0 %v546, 93
        %v548 = vpop.permute.xlu0 %547
        %vm550 = vcmask 1019624
        %551 = vst.msk [vmem:[#allocation2 + $0x20] sm:$0xf] %vm550, %v548
        %552 = vrot.lane.b32.xlu0 %v546, 1
        %v553 = vpop.permute.xlu0 %552
        %vm555 = vcmask 265224
        %556 = vst.msk [vmem:[#allocation2 + $0x24] sm:$0xf] %vm555, %v553
        %v557 = vld [vmem:[#allocation2] sm:$0xff]
        %v558 = vld [vmem:[#allocation2 + $0x8] sm:$0xff]
        %v559 = vld [vmem:[#allocation2 + $0x10] sm:$0xff]
        %v560 = vld [vmem:[#allocation2 + $0x18] sm:$0xff]
        %v561 = vld [vmem:[#allocation2 + $0x20] sm:$0xff]
        %v567 = vcombine.high %v557, %v557
        %v568 = vcombine.high %v558, %v558
        %v569 = vcombine.high %v559, %v559
        %v570 = vcombine.high %v560, %v560
        %575 = vst [vmem:[#allocation3] sm:$0xf] %v557
        %576 = vst [vmem:[#allocation3 + $0x8] sm:$0xf] %v567
        %577 = vst [vmem:[#allocation3 + $0x10] sm:$0xf] %v558
        %578 = vst [vmem:[#allocation3 + $0x18] sm:$0xf] %v568
        %579 = vst [vmem:[#allocation3 + $0x20] sm:$0xf] %v559
        %580 = vst [vmem:[#allocation3 + $0x28] sm:$0xf] %v569
        %581 = vst [vmem:[#allocation3 + $0x30] sm:$0xf] %v560
        %582 = vst [vmem:[#allocation3 + $0x38] sm:$0xf] %v570
        %583 = vst [vmem:[#allocation3 + $0x40] sm:$0xf] %v561
        %v584 = vcombine.low %v557, %v557
        %v585 = vcombine.low %v558, %v558
        %v586 = vcombine.low %v559, %v559
        %v587 = vcombine.low %v560, %v560
        %v588 = vcombine.low %v561, %v561
        %589 = vrot.lane.b32.xlu0 %v584, 127
        %v590 = vpop.permute.xlu0 %589
        %591 = vrot.lane.b32.xlu0 %v557, 127
        %v592 = vpop.permute.xlu0 %591
        %593 = vrot.lane.b32.xlu0 %v585, 127
        %v594 = vpop.permute.xlu0 %593
        %595 = vrot.lane.b32.xlu0 %v558, 127
        %v596 = vpop.permute.xlu0 %595
        %597 = vrot.lane.b32.xlu0 %v586, 127
        %v598 = vpop.permute.xlu0 %597
        %599 = vrot.lane.b32.xlu0 %v559, 127
        %v600 = vpop.permute.xlu0 %599
        %601 = vrot.lane.b32.xlu0 %v587, 127
        %v602 = vpop.permute.xlu0 %601
        %603 = vrot.lane.b32.xlu0 %v560, 127
        %v604 = vpop.permute.xlu0 %603
        %605 = vrot.lane.b32.xlu0 %v588, 127
        %v606 = vpop.permute.xlu0 %605
        %607 = vrot.lane.b32.xlu0 %v561, 127
        %v608 = vpop.permute.xlu0 %607
        %vm609 = vcmask 1039360
        %v610 = vsel %vm609, %v590, %v592
        %v611 = vsel %vm609, %v592, %v594
        %v612 = vsel %vm609, %v594, %v596
        %v613 = vsel %vm609, %v596, %v598
        %v614 = vsel %vm609, %v598, %v600
        %v615 = vsel %vm609, %v600, %v602
        %v616 = vsel %vm609, %v602, %v604
        %v617 = vsel %vm609, %v604, %v606
        %v618 = vsel %vm609, %v606, %v608
        %628 = vst [vmem:[#allocation3] sm:$0xf0] %v610
        %629 = vst [vmem:[#allocation3 + $0x8] sm:$0xf0] %v611
        %630 = vst [vmem:[#allocation3 + $0x10] sm:$0xf0] %v612
        %631 = vst [vmem:[#allocation3 + $0x18] sm:$0xf0] %v613
        %632 = vst [vmem:[#allocation3 + $0x20] sm:$0xf0] %v614
        %633 = vst [vmem:[#allocation3 + $0x28] sm:$0xf0] %v615
        %634 = vst [vmem:[#allocation3 + $0x30] sm:$0xf0] %v616
        %635 = vst [vmem:[#allocation3 + $0x38] sm:$0xf0] %v617
        %636 = vst [vmem:[#allocation3 + $0x40] sm:$0xf0] %v618
        %v637 = vcombine.high %v561, %v561
        %638 = vrot.lane.b32.xlu0 %v557, 126
        %v639 = vpop.permute.xlu0 %638
        %640 = vrot.lane.b32.xlu0 %v567, 126
        %v641 = vpop.permute.xlu0 %640
        %642 = vrot.lane.b32.xlu0 %v558, 126
        %v643 = vpop.permute.xlu0 %642
        %644 = vrot.lane.b32.xlu0 %v568, 126
        %v645 = vpop.permute.xlu0 %644
        %646 = vrot.lane.b32.xlu0 %v559, 126
        %v647 = vpop.permute.xlu0 %646
        %648 = vrot.lane.b32.xlu0 %v569, 126
        %v649 = vpop.permute.xlu0 %648
        %650 = vrot.lane.b32.xlu0 %v560, 126
        %v651 = vpop.permute.xlu0 %650
        %652 = vrot.lane.b32.xlu0 %v570, 126
        %v653 = vpop.permute.xlu0 %652
        %654 = vrot.lane.b32.xlu0 %v561, 126
        %v655 = vpop.permute.xlu0 %654
        %656 = vrot.lane.b32.xlu0 %v637, 126
        %v657 = vpop.permute.xlu0 %656
        %vm658 = vcmask 1031168
        %v659 = vsel %vm658, %v639, %v641
        %v660 = vsel %vm658, %v641, %v643
        %v661 = vsel %vm658, %v643, %v645
        %v662 = vsel %vm658, %v645, %v647
        %v663 = vsel %vm658, %v647, %v649
        %v664 = vsel %vm658, %v649, %v651
        %v665 = vsel %vm658, %v651, %v653
        %v666 = vsel %vm658, %v653, %v655
        %v667 = vsel %vm658, %v655, %v657
        %677 = vst [vmem:[#allocation3 + $0x48] sm:$0xf] %v659
        %678 = vst [vmem:[#allocation3 + $0x50] sm:$0xf] %v660
        %679 = vst [vmem:[#allocation3 + $0x58] sm:$0xf] %v661
        %680 = vst [vmem:[#allocation3 + $0x60] sm:$0xf] %v662
        %681 = vst [vmem:[#allocation3 + $0x68] sm:$0xf] %v663
        %682 = vst [vmem:[#allocation3 + $0x70] sm:$0xf] %v664
        %683 = vst [vmem:[#allocation3 + $0x78] sm:$0xf] %v665
        %684 = vst [vmem:[#allocation3 + $0x80] sm:$0xf] %v666
        %685 = vst [vmem:[#allocation3 + $0x88] sm:$0xf] %v667
        %686 = vrot.lane.b32.xlu0 %v584, 92
        %v687 = vpop.permute.xlu0 %686
        %688 = vrot.lane.b32.xlu0 %v557, 92
        %v689 = vpop.permute.xlu0 %688
        %690 = vrot.lane.b32.xlu0 %v585, 92
        %v691 = vpop.permute.xlu0 %690
        %692 = vrot.lane.b32.xlu0 %v558, 92
        %v693 = vpop.permute.xlu0 %692
        %694 = vrot.lane.b32.xlu0 %v586, 92
        %v695 = vpop.permute.xlu0 %694
        %696 = vrot.lane.b32.xlu0 %v559, 92
        %v697 = vpop.permute.xlu0 %696
        %698 = vrot.lane.b32.xlu0 %v587, 92
        %v699 = vpop.permute.xlu0 %698
        %700 = vrot.lane.b32.xlu0 %v560, 92
        %v701 = vpop.permute.xlu0 %700
        %702 = vrot.lane.b32.xlu0 %v588, 92
        %v703 = vpop.permute.xlu0 %702
        %704 = vrot.lane.b32.xlu0 %v561, 92
        %v705 = vpop.permute.xlu0 %704
        %vm706 = vcmask 752640
        %v707 = vsel %vm706, %v687, %v689
        %v708 = vsel %vm706, %v689, %v691
        %v709 = vsel %vm706, %v691, %v693
        %v710 = vsel %vm706, %v693, %v695
        %v711 = vsel %vm706, %v695, %v697
        %v712 = vsel %vm706, %v697, %v699
        %v713 = vsel %vm706, %v699, %v701
        %v714 = vsel %vm706, %v701, %v703
        %v715 = vsel %vm706, %v703, %v705
        %725 = vst [vmem:[#allocation3 + $0x48] sm:$0xf0] %v707
        %726 = vst [vmem:[#allocation3 + $0x50] sm:$0xf0] %v708
        %727 = vst [vmem:[#allocation3 + $0x58] sm:$0xf0] %v709
        %728 = vst [vmem:[#allocation3 + $0x60] sm:$0xf0] %v710
        %729 = vst [vmem:[#allocation3 + $0x68] sm:$0xf0] %v711
        %730 = vst [vmem:[#allocation3 + $0x70] sm:$0xf0] %v712
        %731 = vst [vmem:[#allocation3 + $0x78] sm:$0xf0] %v713
        %732 = vst [vmem:[#allocation3 + $0x80] sm:$0xf0] %v714
        %733 = vst [vmem:[#allocation3 + $0x88] sm:$0xf0] %v715
        %734 = vrot.lane.b32.xlu0 %v557, 91
        %v735 = vpop.permute.xlu0 %734
        %736 = vrot.lane.b32.xlu0 %v567, 91
        %v737 = vpop.permute.xlu0 %736
        %738 = vrot.lane.b32.xlu0 %v558, 91
        %v739 = vpop.permute.xlu0 %738
        %740 = vrot.lane.b32.xlu0 %v568, 91
        %v741 = vpop.permute.xlu0 %740
        %742 = vrot.lane.b32.xlu0 %v559, 91
        %v743 = vpop.permute.xlu0 %742
        %744 = vrot.lane.b32.xlu0 %v569, 91
        %v745 = vpop.permute.xlu0 %744
        %746 = vrot.lane.b32.xlu0 %v560, 91
        %v747 = vpop.permute.xlu0 %746
        %748 = vrot.lane.b32.xlu0 %v570, 91
        %v749 = vpop.permute.xlu0 %748
        %750 = vrot.lane.b32.xlu0 %v561, 91
        %v751 = vpop.permute.xlu0 %750
        %752 = vrot.lane.b32.xlu0 %v637, 91
        %v753 = vpop.permute.xlu0 %752
        %vm754 = vcmask 744448
        %v755 = vsel %vm754, %v735, %v737
        %v756 = vsel %vm754, %v737, %v739
        %v757 = vsel %vm754, %v739, %v741
        %v758 = vsel %vm754, %v741, %v743
        %v759 = vsel %vm754, %v743, %v745
        %v760 = vsel %vm754, %v745, %v747
        %v761 = vsel %vm754, %v747, %v749
        %v762 = vsel %vm754, %v749, %v751
        %v763 = vsel %vm754, %v751, %v753
        %773 = vst [vmem:[#allocation3 + $0x90] sm:$0xf] %v755
        %774 = vst [vmem:[#allocation3 + $0x98] sm:$0xf] %v756
        %775 = vst [vmem:[#allocation3 + $0xa0] sm:$0xf] %v757
        %776 = vst [vmem:[#allocation3 + $0xa8] sm:$0xf] %v758
        %777 = vst [vmem:[#allocation3 + $0xb0] sm:$0xf] %v759
        %778 = vst [vmem:[#allocation3 + $0xb8] sm:$0xf] %v760
        %779 = vst [vmem:[#allocation3 + $0xc0] sm:$0xf] %v761
        %780 = vst [vmem:[#allocation3 + $0xc8] sm:$0xf] %v762
        %781 = vst [vmem:[#allocation3 + $0xd0] sm:$0xf] %v763
        %782 = vrot.lane.b32.xlu0 %v584, 90
        %v783 = vpop.permute.xlu0 %782
        %784 = vrot.lane.b32.xlu0 %v557, 90
        %v785 = vpop.permute.xlu0 %784
        %786 = vrot.lane.b32.xlu0 %v585, 90
        %v787 = vpop.permute.xlu0 %786
        %788 = vrot.lane.b32.xlu0 %v558, 90
        %v789 = vpop.permute.xlu0 %788
        %790 = vrot.lane.b32.xlu0 %v586, 90
        %v791 = vpop.permute.xlu0 %790
        %792 = vrot.lane.b32.xlu0 %v559, 90
        %v793 = vpop.permute.xlu0 %792
        %794 = vrot.lane.b32.xlu0 %v587, 90
        %v795 = vpop.permute.xlu0 %794
        %796 = vrot.lane.b32.xlu0 %v560, 90
        %v797 = vpop.permute.xlu0 %796
        %798 = vrot.lane.b32.xlu0 %v588, 90
        %v799 = vpop.permute.xlu0 %798
        %800 = vrot.lane.b32.xlu0 %v561, 90
        %v801 = vpop.permute.xlu0 %800
        %vm802 = vcmask 736256
        %v803 = vsel %vm802, %v783, %v785
        %v804 = vsel %vm802, %v785, %v787
        %v805 = vsel %vm802, %v787, %v789
        %v806 = vsel %vm802, %v789, %v791
        %v807 = vsel %vm802, %v791, %v793
        %v808 = vsel %vm802, %v793, %v795
        %v809 = vsel %vm802, %v795, %v797
        %v810 = vsel %vm802, %v797, %v799
        %v811 = vsel %vm802, %v799, %v801
        %821 = vst [vmem:[#allocation3 + $0x90] sm:$0xf0] %v803
        %822 = vst [vmem:[#allocation3 + $0x98] sm:$0xf0] %v804
        %823 = vst [vmem:[#allocation3 + $0xa0] sm:$0xf0] %v805
        %824 = vst [vmem:[#allocation3 + $0xa8] sm:$0xf0] %v806
        %825 = vst [vmem:[#allocation3 + $0xb0] sm:$0xf0] %v807
        %826 = vst [vmem:[#allocation3 + $0xb8] sm:$0xf0] %v808
        %827 = vst [vmem:[#allocation3 + $0xc0] sm:$0xf0] %v809
        %828 = vst [vmem:[#allocation3 + $0xc8] sm:$0xf0] %v810
        %829 = vst [vmem:[#allocation3 + $0xd0] sm:$0xf0] %v811
        %830 = vrot.lane.b32.xlu0 %v557, 56
        %v831 = vpop.permute.xlu0 %830
        %832 = vrot.lane.b32.xlu0 %v567, 56
        %v833 = vpop.permute.xlu0 %832
        %834 = vrot.lane.b32.xlu0 %v558, 56
        %v835 = vpop.permute.xlu0 %834
        %836 = vrot.lane.b32.xlu0 %v568, 56
        %v837 = vpop.permute.xlu0 %836
        %838 = vrot.lane.b32.xlu0 %v559, 56
        %v839 = vpop.permute.xlu0 %838
        %840 = vrot.lane.b32.xlu0 %v569, 56
        %v841 = vpop.permute.xlu0 %840
        %842 = vrot.lane.b32.xlu0 %v560, 56
        %v843 = vpop.permute.xlu0 %842
        %844 = vrot.lane.b32.xlu0 %v570, 56
        %v845 = vpop.permute.xlu0 %844
        %846 = vrot.lane.b32.xlu0 %v561, 56
        %v847 = vpop.permute.xlu0 %846
        %848 = vrot.lane.b32.xlu0 %v637, 56
        %v849 = vpop.permute.xlu0 %848
        %vm850 = vcmask 457728
        %v851 = vsel %vm850, %v831, %v833
        %v852 = vsel %vm850, %v833, %v835
        %v853 = vsel %vm850, %v835, %v837
        %v854 = vsel %vm850, %v837, %v839
        %v855 = vsel %vm850, %v839, %v841
        %v856 = vsel %vm850, %v841, %v843
        %v857 = vsel %vm850, %v843, %v845
        %v858 = vsel %vm850, %v845, %v847
        %v859 = vsel %vm850, %v847, %v849
        %869 = vst [vmem:[#allocation3 + $0xd8] sm:$0xf] %v851
        %870 = vst [vmem:[#allocation3 + $0xe0] sm:$0xf] %v852
        %871 = vst [vmem:[#allocation3 + $0xe8] sm:$0xf] %v853
        %872 = vst [vmem:[#allocation3 + $0xf0] sm:$0xf] %v854
        %873 = vst [vmem:[#allocation3 + $0xf8] sm:$0xf] %v855
        %874 = vst [vmem:[#allocation3 + $0x100] sm:$0xf] %v856
        %875 = vst [vmem:[#allocation3 + $0x108] sm:$0xf] %v857
        %876 = vst [vmem:[#allocation3 + $0x110] sm:$0xf] %v858
        %877 = vst [vmem:[#allocation3 + $0x118] sm:$0xf] %v859
        %878 = vrot.lane.b32.xlu0 %v584, 55
        %v879 = vpop.permute.xlu0 %878
        %880 = vrot.lane.b32.xlu0 %v557, 55
        %v881 = vpop.permute.xlu0 %880
        %882 = vrot.lane.b32.xlu0 %v585, 55
        %v883 = vpop.permute.xlu0 %882
        %884 = vrot.lane.b32.xlu0 %v558, 55
        %v885 = vpop.permute.xlu0 %884
        %886 = vrot.lane.b32.xlu0 %v586, 55
        %v887 = vpop.permute.xlu0 %886
        %888 = vrot.lane.b32.xlu0 %v559, 55
        %v889 = vpop.permute.xlu0 %888
        %890 = vrot.lane.b32.xlu0 %v587, 55
        %v891 = vpop.permute.xlu0 %890
        %892 = vrot.lane.b32.xlu0 %v560, 55
        %v893 = vpop.permute.xlu0 %892
        %894 = vrot.lane.b32.xlu0 %v588, 55
        %v895 = vpop.permute.xlu0 %894
        %896 = vrot.lane.b32.xlu0 %v561, 55
        %v897 = vpop.permute.xlu0 %896
        %vm898 = vcmask 449536
        %v899 = vsel %vm898, %v879, %v881
        %v900 = vsel %vm898, %v881, %v883
        %v901 = vsel %vm898, %v883, %v885
        %v902 = vsel %vm898, %v885, %v887
        %v903 = vsel %vm898, %v887, %v889
        %v904 = vsel %vm898, %v889, %v891
        %v905 = vsel %vm898, %v891, %v893
        %v906 = vsel %vm898, %v893, %v895
        %v907 = vsel %vm898, %v895, %v897
        %917 = vst [vmem:[#allocation3 + $0xd8] sm:$0xf0] %v899
        %918 = vst [vmem:[#allocation3 + $0xe0] sm:$0xf0] %v900
        %919 = vst [vmem:[#allocation3 + $0xe8] sm:$0xf0] %v901
        %920 = vst [vmem:[#allocation3 + $0xf0] sm:$0xf0] %v902
        %921 = vst [vmem:[#allocation3 + $0xf8] sm:$0xf0] %v903
        %922 = vst [vmem:[#allocation3 + $0x100] sm:$0xf0] %v904
        %923 = vst [vmem:[#allocation3 + $0x108] sm:$0xf0] %v905
        %924 = vst [vmem:[#allocation3 + $0x110] sm:$0xf0] %v906
        %925 = vst [vmem:[#allocation3 + $0x118] sm:$0xf0] %v907
        %926 = vrot.lane.b32.xlu0 %v557, 54
        %v927 = vpop.permute.xlu0 %926
        %928 = vrot.lane.b32.xlu0 %v567, 54
        %v929 = vpop.permute.xlu0 %928
        %930 = vrot.lane.b32.xlu0 %v558, 54
        %v931 = vpop.permute.xlu0 %930
        %932 = vrot.lane.b32.xlu0 %v568, 54
        %v933 = vpop.permute.xlu0 %932
        %934 = vrot.lane.b32.xlu0 %v559, 54
        %v935 = vpop.permute.xlu0 %934
        %936 = vrot.lane.b32.xlu0 %v569, 54
        %v937 = vpop.permute.xlu0 %936
        %938 = vrot.lane.b32.xlu0 %v560, 54
        %v939 = vpop.permute.xlu0 %938
        %940 = vrot.lane.b32.xlu0 %v570, 54
        %v941 = vpop.permute.xlu0 %940
        %942 = vrot.lane.b32.xlu0 %v561, 54
        %v943 = vpop.permute.xlu0 %942
        %944 = vrot.lane.b32.xlu0 %v637, 54
        %v945 = vpop.permute.xlu0 %944
        %vm946 = vcmask 441344
        %v947 = vsel %vm946, %v927, %v929
        %v948 = vsel %vm946, %v929, %v931
        %v949 = vsel %vm946, %v931, %v933
        %v950 = vsel %vm946, %v933, %v935
        %v951 = vsel %vm946, %v935, %v937
        %v952 = vsel %vm946, %v937, %v939
        %v953 = vsel %vm946, %v939, %v941
        %v954 = vsel %vm946, %v941, %v943
        %v955 = vsel %vm946, %v943, %v945
        %965 = vst [vmem:[#allocation3 + $0x120] sm:$0xf] %v947
        %966 = vst [vmem:[#allocation3 + $0x128] sm:$0xf] %v948
        %967 = vst [vmem:[#allocation3 + $0x130] sm:$0xf] %v949
        %968 = vst [vmem:[#allocation3 + $0x138] sm:$0xf] %v950
        %969 = vst [vmem:[#allocation3 + $0x140] sm:$0xf] %v951
        %970 = vst [vmem:[#allocation3 + $0x148] sm:$0xf] %v952
        %971 = vst [vmem:[#allocation3 + $0x150] sm:$0xf] %v953
        %972 = vst [vmem:[#allocation3 + $0x158] sm:$0xf] %v954
        %973 = vst [vmem:[#allocation3 + $0x160] sm:$0xf] %v955
        %v974 = vld [vmem:[%s2] sm:$0xf]
        %v975 = vld [vmem:[#allocation3] sm:$0xff]
        %v976 = vld [vmem:[#allocation3 + $0x8] sm:$0xff]
        %v977 = vld [vmem:[#allocation3 + $0x10] sm:$0xff]
        %v978 = vld [vmem:[#allocation3 + $0x18] sm:$0xff]
        %v979 = vld [vmem:[#allocation3 + $0x20] sm:$0xff]
        %v980 = vld [vmem:[#allocation3 + $0x28] sm:$0xff]
        %v981 = vld [vmem:[#allocation3 + $0x30] sm:$0xff]
        %v982 = vld [vmem:[#allocation3 + $0x38] sm:$0xff]
        %v983 = vld [vmem:[#allocation3 + $0x40] sm:$0xff]
        %v984 = vld [vmem:[#allocation3 + $0x48] sm:$0xff]
        %v985 = vld [vmem:[#allocation3 + $0x50] sm:$0xff]
        %v986 = vld [vmem:[#allocation3 + $0x58] sm:$0xff]
        %v987 = vld [vmem:[#allocation3 + $0x60] sm:$0xff]
        %v988 = vld [vmem:[#allocation3 + $0x68] sm:$0xff]
        %v989 = vld [vmem:[#allocation3 + $0x70] sm:$0xff]
        %v990 = vld [vmem:[#allocation3 + $0x78] sm:$0xff]
        %v991 = vld [vmem:[#allocation3 + $0x80] sm:$0xff]
        %v992 = vld [vmem:[#allocation3 + $0x88] sm:$0xff]
        %v993 = vld [vmem:[#allocation3 + $0x90] sm:$0xff]
        %v994 = vld [vmem:[#allocation3 + $0x98] sm:$0xff]
        %v995 = vld [vmem:[#allocation3 + $0xa0] sm:$0xff]
        %v996 = vld [vmem:[#allocation3 + $0xa8] sm:$0xff]
        %v997 = vld [vmem:[#allocation3 + $0xb0] sm:$0xff]
        %v998 = vld [vmem:[#allocation3 + $0xb8] sm:$0xff]
        %v999 = vld [vmem:[#allocation3 + $0xc0] sm:$0xff]
        %v1000 = vld [vmem:[#allocation3 + $0xc8] sm:$0xff]
        %v1001 = vld [vmem:[#allocation3 + $0xd0] sm:$0xff]
        %v1002 = vld [vmem:[#allocation3 + $0xd8] sm:$0xff]
        %v1003 = vld [vmem:[#allocation3 + $0xe0] sm:$0xff]
        %v1004 = vld [vmem:[#allocation3 + $0xe8] sm:$0xff]
        %v1005 = vld [vmem:[#allocation3 + $0xf0] sm:$0xff]
        %v1006 = vld [vmem:[#allocation3 + $0xf8] sm:$0xff]
        %v1007 = vld [vmem:[#allocation3 + $0x100] sm:$0xff]
        %v1008 = vld [vmem:[#allocation3 + $0x108] sm:$0xff]
        %v1009 = vld [vmem:[#allocation3 + $0x110] sm:$0xff]
        %v1010 = vld [vmem:[#allocation3 + $0x118] sm:$0xff]
        %v1011 = vld [vmem:[#allocation3 + $0x120] sm:$0xf]
        %v1012 = vld [vmem:[#allocation3 + $0x128] sm:$0xf]
        %v1013 = vld [vmem:[#allocation3 + $0x130] sm:$0xf]
        %v1014 = vld [vmem:[#allocation3 + $0x138] sm:$0xf]
        %v1015 = vld [vmem:[#allocation3 + $0x140] sm:$0xf]
        %v1016 = vld [vmem:[#allocation3 + $0x148] sm:$0xf]
        %v1017 = vld [vmem:[#allocation3 + $0x150] sm:$0xf]
        %v1018 = vld [vmem:[#allocation3 + $0x158] sm:$0xf]
        %v1019 = vld [vmem:[#allocation3 + $0x160] sm:$0xf]
        %v1020 = vld [vmem:[%s3] sm:$0xf]
        %1022 = vset.pattern.permute.xlu0 0
        %1023 = vperm.xlu0 %1022, %v1020
        %v1024 = vpop.permute.xlu0 %1023
        %vm1026 = vcmask 293888
        %v1028 = vsel %vm1026, %v974, 0
        %vm1030 = vcmask 1043456
        %v1032 = vsel %vm1030, %v1011, 0
        %v1035 = vsel %vm1030, %v1012, 0
        %v1038 = vsel %vm1030, %v1013, 0
        %v1041 = vsel %vm1030, %v1014, 0
        %v1044 = vsel %vm1030, %v1015, 0
        %v1047 = vsel %vm1030, %v1016, 0
        %v1050 = vsel %vm1030, %v1017, 0
        %v1053 = vsel %vm1030, %v1018, 0
        %v1056 = vsel %vm1030, %v1019, 0
        %1058 = vmatprep.subr.mxu0 %v976
        %1059 = vmatpush1.msra.mxu0 %v975
        %1060 = vmatprep.subr.mxu0 %v985
        %1061 = vmatpush1.msra.mxu0 %v984
        %1062 = vmatprep.subr.mxu0 %v994
        %1063 = vmatpush1.msra.mxu0 %v993
        %1064 = vmatprep.subr.mxu0 %v1003
        %1065 = vmatpush1.msra.mxu0 %v1002
        %1066 = vmatprep.subr.mxu0 %v1035
        %1067 = vmatpush1.msra.mxu0 %v1032
        %1068 = vmatprep.subr.mxu0 0.0
        %1069 = vmatpush1.msra.mxu0 0.0
        %1070 = vmatprep.subr.mxu0 0.0
        %1071 = vmatpush1.msra.mxu0 0.0
        %1072 = vmatprep.subr.mxu0 0.0
        %1073 = vmatpush1.msra.mxu0 0.0
        %1074 = vmatprep.subr.mxu0 0.0
        %1075 = vmatpush1.msra.mxu0 0.0
        %1076 = vmatprep.subr.mxu0 0.0
        %1077 = vmatpush1.msra.mxu0 0.0
        %1078 = vmatprep.subr.mxu0 0.0
        %1079 = vmatpush1.msra.mxu0 0.0
        %1080 = vmatprep.subr.mxu0 0.0
        %1081 = vmatpush1.msra.mxu0 0.0
        %1082 = vmatprep.subr.mxu0 0.0
        %1083 = vmatpush1.msra.mxu0 0.0
        %1084 = vmatprep.subr.mxu0 0.0
        %1085 = vmatpush1.msra.mxu0 0.0
        %1086 = vmatprep.subr.mxu0 0.0
        %1087 = vmatpush1.msra.mxu0 0.0
        %1088 = vmatprep.subr.mxu0 0.0
        %1089 = vmatpush1.msra.mxu0 0.0
        %1090 = vmatprep.subr.mxu0 0.0
        %1091 = vmatpush1.msra.mxu0 0.0
        %1092 = vmatprep.subr.mxu0 0.0
        %1093 = vmatpush1.msra.mxu0 0.0
        %1094 = vmatprep.subr.mxu0 0.0
        %1095 = vmatpush1.msra.mxu0 0.0
        %1096 = vmatprep.subr.mxu0 0.0
        %1097 = vmatpush1.msra.mxu0 0.0
        %1098 = vmatprep.subr.mxu0 0.0
        %1099 = vmatpush1.msra.mxu0 0.0
        %1100 = vmatprep.subr.mxu0 0.0
        %1101 = vmatpush1.msra.mxu0 0.0
        %1102 = vmatprep.subr.mxu0 0.0
        %1103 = vmatpush1.msra.mxu0 0.0
        %1104 = vmatprep.subr.mxu0 0.0
        %1105 = vmatpush1.msra.mxu0 0.0
        %1106 = vmatprep.subr.mxu0 0.0
        %1107 = vmatpush1.msra.mxu0 0.0
        %1108 = vmatprep.subr.mxu0 0.0
        %1109 = vmatpush1.msra.mxu0 0.0
        %1110 = vmatprep.subr.mxu0 0.0
        %1111 = vmatpush1.msra.mxu0 0.0
        %1112 = vmatprep.subr.mxu0 0.0
        %1113 = vmatpush1.msra.mxu0 0.0
        %1114 = vmatprep.subr.mxu0 0.0
        %1115 = vmatpush1.msra.mxu0 0.0
        %1116 = vmatprep.subr.mxu0 0.0
        %1117 = vmatpush1.msra.mxu0 0.0
        %1118 = vmatprep.subr.mxu0 0.0
        %1119 = vmatpush1.msra.mxu0 0.0
        %1120 = vmatprep.subr.mxu0 0.0
        %1121 = vmatpush1.msra.mxu0 0.0
        %1122 = vmatprep.mubr.f32.mxu0 0.0
        %1123 = vmatmul.mubr.f32.gmra.mrb[0].mxu0 %v1028
        %v1124 = vpop.f32.mrb[0].mxu0
        %v1125 = vadd.f32 %v1024, %v1124
        %v1126 = vpop.f32.mrb[0].mxu0
        %v1127 = vadd.f32 %v1024, %v1126
        %1128 = vdwg.mxu0
        %1129 = vmatprep.subr.mxu0 %v978
        %1130 = vmatpush1.msra.mxu0 %v977
        %1131 = vmatprep.subr.mxu0 %v987
        %1132 = vmatpush1.msra.mxu0 %v986
        %1133 = vmatprep.subr.mxu0 %v996
        %1134 = vmatpush1.msra.mxu0 %v995
        %1135 = vmatprep.subr.mxu0 %v1005
        %1136 = vmatpush1.msra.mxu0 %v1004
        %1137 = vmatprep.subr.mxu0 %v1041
        %1138 = vmatpush1.msra.mxu0 %v1038
        %1139 = vmatprep.subr.mxu0 0.0
        %1140 = vmatpush1.msra.mxu0 0.0
        %1141 = vmatprep.subr.mxu0 0.0
        %1142 = vmatpush1.msra.mxu0 0.0
        %1143 = vmatprep.subr.mxu0 0.0
        %1144 = vmatpush1.msra.mxu0 0.0
        %1145 = vmatprep.subr.mxu0 0.0
        %1146 = vmatpush1.msra.mxu0 0.0
        %1147 = vmatprep.subr.mxu0 0.0
        %1148 = vmatpush1.msra.mxu0 0.0
        %1149 = vmatprep.subr.mxu0 0.0
        %1150 = vmatpush1.msra.mxu0 0.0
        %1151 = vmatprep.subr.mxu0 0.0
        %1152 = vmatpush1.msra.mxu0 0.0
        %1153 = vmatprep.subr.mxu0 0.0
        %1154 = vmatpush1.msra.mxu0 0.0
        %1155 = vmatprep.subr.mxu0 0.0
        %1156 = vmatpush1.msra.mxu0 0.0
        %1157 = vmatprep.subr.mxu0 0.0
        %1158 = vmatpush1.msra.mxu0 0.0
        %1159 = vmatprep.subr.mxu0 0.0
        %1160 = vmatpush1.msra.mxu0 0.0
        %1161 = vmatprep.subr.mxu0 0.0
        %1162 = vmatpush1.msra.mxu0 0.0
        %1163 = vmatprep.subr.mxu0 0.0
        %1164 = vmatpush1.msra.mxu0 0.0
        %1165 = vmatprep.subr.mxu0 0.0
        %1166 = vmatpush1.msra.mxu0 0.0
        %1167 = vmatprep.subr.mxu0 0.0
        %1168 = vmatpush1.msra.mxu0 0.0
        %1169 = vmatprep.subr.mxu0 0.0
        %1170 = vmatpush1.msra.mxu0 0.0
        %1171 = vmatprep.subr.mxu0 0.0
        %1172 = vmatpush1.msra.mxu0 0.0
        %1173 = vmatprep.subr.mxu0 0.0
        %1174 = vmatpush1.msra.mxu0 0.0
        %1175 = vmatprep.subr.mxu0 0.0
        %1176 = vmatpush1.msra.mxu0 0.0
        %1177 = vmatprep.subr.mxu0 0.0
        %1178 = vmatpush1.msra.mxu0 0.0
        %1179 = vmatprep.subr.mxu0 0.0
        %1180 = vmatpush1.msra.mxu0 0.0
        %1181 = vmatprep.subr.mxu0 0.0
        %1182 = vmatpush1.msra.mxu0 0.0
        %1183 = vmatprep.subr.mxu0 0.0
        %1184 = vmatpush1.msra.mxu0 0.0
        %1185 = vmatprep.subr.mxu0 0.0
        %1186 = vmatpush1.msra.mxu0 0.0
        %1187 = vmatprep.subr.mxu0 0.0
        %1188 = vmatpush1.msra.mxu0 0.0
        %1189 = vmatprep.subr.mxu0 0.0
        %1190 = vmatpush1.msra.mxu0 0.0
        %1191 = vmatprep.subr.mxu0 0.0
        %1192 = vmatpush1.msra.mxu0 0.0
        %1193 = vmatprep.mubr.f32.mxu0 0.0
        %1194 = vmatmul.mubr.f32.gmra.mrb[0].mxu0 %v1028
        %v1195 = vpop.f32.mrb[0].mxu0
        %v1196 = vadd.f32 %v1024, %v1195
        %v1197 = vpop.f32.mrb[0].mxu0
        %v1198 = vadd.f32 %v1024, %v1197
        %1199 = vdwg.mxu0
        %1200 = vmatprep.subr.mxu0 %v980
        %1201 = vmatpush1.msra.mxu0 %v979
        %1202 = vmatprep.subr.mxu0 %v989
        %1203 = vmatpush1.msra.mxu0 %v988
        %1204 = vmatprep.subr.mxu0 %v998
        %1205 = vmatpush1.msra.mxu0 %v997
        %1206 = vmatprep.subr.mxu0 %v1007
        %1207 = vmatpush1.msra.mxu0 %v1006
        %1208 = vmatprep.subr.mxu0 %v1047
        %1209 = vmatpush1.msra.mxu0 %v1044
        %1210 = vmatprep.subr.mxu0 0.0
        %1211 = vmatpush1.msra.mxu0 0.0
        %1212 = vmatprep.subr.mxu0 0.0
        %1213 = vmatpush1.msra.mxu0 0.0
        %1214 = vmatprep.subr.mxu0 0.0
        %1215 = vmatpush1.msra.mxu0 0.0
        %1216 = vmatprep.subr.mxu0 0.0
        %1217 = vmatpush1.msra.mxu0 0.0
        %1218 = vmatprep.subr.mxu0 0.0
        %1219 = vmatpush1.msra.mxu0 0.0
        %1220 = vmatprep.subr.mxu0 0.0
        %1221 = vmatpush1.msra.mxu0 0.0
        %1222 = vmatprep.subr.mxu0 0.0
        %1223 = vmatpush1.msra.mxu0 0.0
        %1224 = vmatprep.subr.mxu0 0.0
        %1225 = vmatpush1.msra.mxu0 0.0
        %1226 = vmatprep.subr.mxu0 0.0
        %1227 = vmatpush1.msra.mxu0 0.0
        %1228 = vmatprep.subr.mxu0 0.0
        %1229 = vmatpush1.msra.mxu0 0.0
        %1230 = vmatprep.subr.mxu0 0.0
        %1231 = vmatpush1.msra.mxu0 0.0
        %1232 = vmatprep.subr.mxu0 0.0
        %1233 = vmatpush1.msra.mxu0 0.0
        %1234 = vmatprep.subr.mxu0 0.0
        %1235 = vmatpush1.msra.mxu0 0.0
        %1236 = vmatprep.subr.mxu0 0.0
        %1237 = vmatpush1.msra.mxu0 0.0
        %1238 = vmatprep.subr.mxu0 0.0
        %1239 = vmatpush1.msra.mxu0 0.0
        %1240 = vmatprep.subr.mxu0 0.0
        %1241 = vmatpush1.msra.mxu0 0.0
        %1242 = vmatprep.subr.mxu0 0.0
        %1243 = vmatpush1.msra.mxu0 0.0
        %1244 = vmatprep.subr.mxu0 0.0
        %1245 = vmatpush1.msra.mxu0 0.0
        %1246 = vmatprep.subr.mxu0 0.0
        %1247 = vmatpush1.msra.mxu0 0.0
        %1248 = vmatprep.subr.mxu0 0.0
        %1249 = vmatpush1.msra.mxu0 0.0
        %1250 = vmatprep.subr.mxu0 0.0
        %1251 = vmatpush1.msra.mxu0 0.0
        %1252 = vmatprep.subr.mxu0 0.0
        %1253 = vmatpush1.msra.mxu0 0.0
        %1254 = vmatprep.subr.mxu0 0.0
        %1255 = vmatpush1.msra.mxu0 0.0
        %1256 = vmatprep.subr.mxu0 0.0
        %1257 = vmatpush1.msra.mxu0 0.0
        %1258 = vmatprep.subr.mxu0 0.0
        %1259 = vmatpush1.msra.mxu0 0.0
        %1260 = vmatprep.subr.mxu0 0.0
        %1261 = vmatpush1.msra.mxu0 0.0
        %1262 = vmatprep.subr.mxu0 0.0
        %1263 = vmatpush1.msra.mxu0 0.0
        %1264 = vmatprep.mubr.f32.mxu0 0.0
        %1265 = vmatmul.mubr.f32.gmra.mrb[0].mxu0 %v1028
        %v1266 = vpop.f32.mrb[0].mxu0
        %v1267 = vadd.f32 %v1024, %v1266
        %v1268 = vpop.f32.mrb[0].mxu0
        %v1269 = vadd.f32 %v1024, %v1268
        %1270 = vdwg.mxu0
        %1271 = vmatprep.subr.mxu0 %v982
        %1272 = vmatpush1.msra.mxu0 %v981
        %1273 = vmatprep.subr.mxu0 %v991
        %1274 = vmatpush1.msra.mxu0 %v990
        %1275 = vmatprep.subr.mxu0 %v1000
        %1276 = vmatpush1.msra.mxu0 %v999
        %1277 = vmatprep.subr.mxu0 %v1009
        %1278 = vmatpush1.msra.mxu0 %v1008
        %1279 = vmatprep.subr.mxu0 %v1053
        %1280 = vmatpush1.msra.mxu0 %v1050
        %1281 = vmatprep.subr.mxu0 0.0
        %1282 = vmatpush1.msra.mxu0 0.0
        %1283 = vmatprep.subr.mxu0 0.0
        %1284 = vmatpush1.msra.mxu0 0.0
        %1285 = vmatprep.subr.mxu0 0.0
        %1286 = vmatpush1.msra.mxu0 0.0
        %1287 = vmatprep.subr.mxu0 0.0
        %1288 = vmatpush1.msra.mxu0 0.0
        %1289 = vmatprep.subr.mxu0 0.0
        %1290 = vmatpush1.msra.mxu0 0.0
        %1291 = vmatprep.subr.mxu0 0.0
        %1292 = vmatpush1.msra.mxu0 0.0
        %1293 = vmatprep.subr.mxu0 0.0
        %1294 = vmatpush1.msra.mxu0 0.0
        %1295 = vmatprep.subr.mxu0 0.0
        %1296 = vmatpush1.msra.mxu0 0.0
        %1297 = vmatprep.subr.mxu0 0.0
        %1298 = vmatpush1.msra.mxu0 0.0
        %1299 = vmatprep.subr.mxu0 0.0
        %1300 = vmatpush1.msra.mxu0 0.0
        %1301 = vmatprep.subr.mxu0 0.0
        %1302 = vmatpush1.msra.mxu0 0.0
        %1303 = vmatprep.subr.mxu0 0.0
        %1304 = vmatpush1.msra.mxu0 0.0
        %1305 = vmatprep.subr.mxu0 0.0
        %1306 = vmatpush1.msra.mxu0 0.0
        %1307 = vmatprep.subr.mxu0 0.0
        %1308 = vmatpush1.msra.mxu0 0.0
        %1309 = vmatprep.subr.mxu0 0.0
        %1310 = vmatpush1.msra.mxu0 0.0
        %1311 = vmatprep.subr.mxu0 0.0
        %1312 = vmatpush1.msra.mxu0 0.0
        %1313 = vmatprep.subr.mxu0 0.0
        %1314 = vmatpush1.msra.mxu0 0.0
        %1315 = vmatprep.subr.mxu0 0.0
        %1316 = vmatpush1.msra.mxu0 0.0
        %1317 = vmatprep.subr.mxu0 0.0
        %1318 = vmatpush1.msra.mxu0 0.0
        %1319 = vmatprep.subr.mxu0 0.0
        %1320 = vmatpush1.msra.mxu0 0.0
        %1321 = vmatprep.subr.mxu0 0.0
        %1322 = vmatpush1.msra.mxu0 0.0
        %1323 = vmatprep.subr.mxu0 0.0
        %1324 = vmatpush1.msra.mxu0 0.0
        %1325 = vmatprep.subr.mxu0 0.0
        %1326 = vmatpush1.msra.mxu0 0.0
        %1327 = vmatprep.subr.mxu0 0.0
        %1328 = vmatpush1.msra.mxu0 0.0
        %1329 = vmatprep.subr.mxu0 0.0
        %1330 = vmatpush1.msra.mxu0 0.0
        %1331 = vmatprep.subr.mxu0 0.0
        %1332 = vmatpush1.msra.mxu0 0.0
        %1333 = vmatprep.subr.mxu0 0.0
        %1334 = vmatpush1.msra.mxu0 0.0
        %1335 = vmatprep.mubr.f32.mxu0 0.0
        %1336 = vmatmul.mubr.f32.gmra.mrb[0].mxu0 %v1028
        %v1337 = vpop.f32.mrb[0].mxu0
        %v1338 = vadd.f32 %v1024, %v1337
        %v1339 = vpop.f32.mrb[0].mxu0
        %v1340 = vadd.f32 %v1024, %v1339
        %1341 = vdwg.mxu0
        %1342 = vmatprep.subr.mxu0 0.0
        %1343 = vmatpush1.msra.mxu0 %v983
        %1344 = vmatprep.subr.mxu0 0.0
        %1345 = vmatpush1.msra.mxu0 %v992
        %1346 = vmatprep.subr.mxu0 0.0
        %1347 = vmatpush1.msra.mxu0 %v1001
        %1348 = vmatprep.subr.mxu0 0.0
        %1349 = vmatpush1.msra.mxu0 %v1010
        %1350 = vmatprep.subr.mxu0 0.0
        %1351 = vmatpush1.msra.mxu0 %v1056
        %1352 = vmatprep.subr.mxu0 0.0
        %1353 = vmatpush1.msra.mxu0 0.0
        %1354 = vmatprep.subr.mxu0 0.0
        %1355 = vmatpush1.msra.mxu0 0.0
        %1356 = vmatprep.subr.mxu0 0.0
        %1357 = vmatpush1.msra.mxu0 0.0
        %1358 = vmatprep.subr.mxu0 0.0
        %1359 = vmatpush1.msra.mxu0 0.0
        %1360 = vmatprep.subr.mxu0 0.0
        %1361 = vmatpush1.msra.mxu0 0.0
        %1362 = vmatprep.subr.mxu0 0.0
        %1363 = vmatpush1.msra.mxu0 0.0
        %1364 = vmatprep.subr.mxu0 0.0
        %1365 = vmatpush1.msra.mxu0 0.0
        %1366 = vmatprep.subr.mxu0 0.0
        %1367 = vmatpush1.msra.mxu0 0.0
        %1368 = vmatprep.subr.mxu0 0.0
        %1369 = vmatpush1.msra.mxu0 0.0
        %1370 = vmatprep.subr.mxu0 0.0
        %1371 = vmatpush1.msra.mxu0 0.0
        %1372 = vmatprep.subr.mxu0 0.0
        %1373 = vmatpush1.msra.mxu0 0.0
        %1374 = vmatprep.subr.mxu0 0.0
        %1375 = vmatpush1.msra.mxu0 0.0
        %1376 = vmatprep.subr.mxu0 0.0
        %1377 = vmatpush1.msra.mxu0 0.0
        %1378 = vmatprep.subr.mxu0 0.0
        %1379 = vmatpush1.msra.mxu0 0.0
        %1380 = vmatprep.subr.mxu0 0.0
        %1381 = vmatpush1.msra.mxu0 0.0
        %1382 = vmatprep.subr.mxu0 0.0
        %1383 = vmatpush1.msra.mxu0 0.0
        %1384 = vmatprep.subr.mxu0 0.0
        %1385 = vmatpush1.msra.mxu0 0.0
        %1386 = vmatprep.subr.mxu0 0.0
        %1387 = vmatpush1.msra.mxu0 0.0
        %1388 = vmatprep.subr.mxu0 0.0
        %1389 = vmatpush1.msra.mxu0 0.0
        %1390 = vmatprep.subr.mxu0 0.0
        %1391 = vmatpush1.msra.mxu0 0.0
        %1392 = vmatprep.subr.mxu0 0.0
        %1393 = vmatpush1.msra.mxu0 0.0
        %1394 = vmatprep.subr.mxu0 0.0
        %1395 = vmatpush1.msra.mxu0 0.0
        %1396 = vmatprep.subr.mxu0 0.0
        %1397 = vmatpush1.msra.mxu0 0.0
        %1398 = vmatprep.subr.mxu0 0.0
        %1399 = vmatpush1.msra.mxu0 0.0
        %1400 = vmatprep.subr.mxu0 0.0
        %1401 = vmatpush1.msra.mxu0 0.0
        %1402 = vmatprep.subr.mxu0 0.0
        %1403 = vmatpush1.msra.mxu0 0.0
        %1404 = vmatprep.subr.mxu0 0.0
        %1405 = vmatpush1.msra.mxu0 0.0
        %1406 = vmatprep.mubr.f32.mxu0 0.0
        %1407 = vmatmul.mubr.f32.gmra.mrb[0].mxu0 %v1028
        %v1408 = vpop.f32.mrb[0].mxu0
        %v1409 = vadd.f32 %v1024, %v1408
        %v1410 = vpop.f32.mrb[0].mxu0
        %1411 = vdwg.mxu0
        %vm1412 = vcmp.ge.f32.partialorder %v1125, 0.0
        %vm1413 = vcmp.ge.f32.partialorder %v1127, 0.0
        %vm1414 = vcmp.ge.f32.partialorder %v1196, 0.0
        %vm1415 = vcmp.ge.f32.partialorder %v1198, 0.0
        %vm1416 = vcmp.ge.f32.partialorder %v1267, 0.0
        %vm1417 = vcmp.ge.f32.partialorder %v1269, 0.0
        %vm1418 = vcmp.ge.f32.partialorder %v1338, 0.0
        %vm1419 = vcmp.ge.f32.partialorder %v1340, 0.0
        %vm1420 = vcmp.ge.f32.partialorder %v1409, 0.0
        %v1421 = vmul.f32 %v1125, 0.2
        %v1422 = vmul.f32 %v1127, 0.2
        %v1423 = vmul.f32 %v1196, 0.2
        %v1424 = vmul.f32 %v1198, 0.2
        %v1425 = vmul.f32 %v1267, 0.2
        %v1426 = vmul.f32 %v1269, 0.2
        %v1427 = vmul.f32 %v1338, 0.2
        %v1428 = vmul.f32 %v1340, 0.2
        %v1429 = vmul.f32 %v1409, 0.2
        %v1430 = vsel %vm1412, %v1125, %v1421
        %v1431 = vsel %vm1413, %v1127, %v1422
        %v1432 = vsel %vm1414, %v1196, %v1423
        %v1433 = vsel %vm1415, %v1198, %v1424
        %v1434 = vsel %vm1416, %v1267, %v1425
        %v1435 = vsel %vm1417, %v1269, %v1426
        %v1436 = vsel %vm1418, %v1338, %v1427
        %v1437 = vsel %vm1419, %v1340, %v1428
        %v1438 = vsel %vm1420, %v1409, %v1429
        %v1447 = vcombine.low %v1430, %v1431
        %v1448 = vcombine.low %v1432, %v1433
        %v1449 = vcombine.low %v1434, %v1435
        %v1450 = vcombine.low %v1436, %v1437
        %1455 = vst [vmem:[%s190] sm:$0xff] %v1447
        %1456 = vst [vmem:[%s190 + $0x8] sm:$0xff] %v1448
        %1457 = vst [vmem:[%s190 + $0x10] sm:$0xff] %v1449
        %1458 = vst [vmem:[%s190 + $0x18] sm:$0xff] %v1450
        %1459 = vst [vmem:[%s190 + $0x20] sm:$0xf] %v1438
        %s1460 = sand.u32 %s115, 1
        %s1461 = scalar_lea.sflag [#allocation5], %s1460
        %s1462 = sand.u32 %s115, 1
        %s1463 = smul.addr %s1462, 36
        %s1464 = scalar_lea.vmem [#allocation4], %s1463
        // Predicated region
        $region37: #{tpu_custom_call.1} parent=35 // pred_check
          %p1465 = pneg %p125
        $region38: #{tpu_custom_call.1} parent=35 // pred_check_branch
          %1467 = sbr.rel (%p1465) target = $region40
        $region39: #{tpu_custom_call.1} parent=35 // pred_region
          %s1469 = ssub.s32 576, 576
          %1470 = vsyncadd %s1461, %s1469
          %s1471 = smul.addr %s18, 9
          %s1472 = smul.addr %s1471, 64
          %s1473 = scalar_lea.hbm %s4, %s1472
          %s1475 = sshll.u32 %s1464, 4
          %s1476 = int_to_ptr.vmem [resolvable:$true] %s1475
          %1478 = dma.vmem_to_hbm [thread:$0]  %s1476, 576, %s1473, %s1461
        $region40: #{tpu_custom_call.1} parent=35 // pred_fallthru
          _
      $region36: #{tpu_custom_call.1} parent=5 // pred_fallthru
        _
      %p1479 = scmp.le.s32.totalorder 2, %s13
      // Predicated region
      $region41: #{tpu_custom_call.1} parent=5 // pred_check
        %p1480 = pneg %p1479
      $region42: #{tpu_custom_call.1} parent=5 // pred_check_branch
        %1482 = sbr.rel (%p1480) target = $region44
      $region43: #{tpu_custom_call.1} parent=5 // pred_region
        %s1483 = ssub.s32 %s13, 2
        // Predicated region
        $region45: #{tpu_custom_call.1} parent=43 // pred_check
          %p1484 = pneg %p131
        $region46: #{tpu_custom_call.1} parent=43 // pred_check_branch
          %1486 = sbr.rel (%p1484) target = $region48
        $region47: #{tpu_custom_call.1} parent=43 // pred_region
          %s1487 = sand.u32 %s116, 1
          %s1488 = scalar_lea.sflag [#allocation5], %s1487
          %s1489 = sand.u32 %s116, 1
          %s1490 = smul.addr %s1489, 36
          %s1491 = scalar_lea.vmem [#allocation4], %s1490
          %1492 = dma.done %s1488, 576
        $region48: #{tpu_custom_call.1} parent=43 // pred_fallthru
          _
      $region44: #{tpu_custom_call.1} parent=5 // pred_fallthru
        _
    $region6: #{tpu_custom_call.1} parent=1 // loop_footer
      %s17 = sadd.s32 1, %s13
    $region7: #{tpu_custom_call.1} parent=1 // loop_footer_branch
      %12 = sbr.rel target = $region3
    $region8: #{tpu_custom_call.1} parent=1 // loop_exit
      _
    %1493 = vsyncpa [#allocation5], 1
    %s1494 = scalar_lea.sflag [#allocation5], 1
    %1495 = vsyncpa %s1494, 1

</llo_original>
